<compile_context>
chip_gen: v7x
topology: tpu7x:2x2x1
jax: 0.10.0
libtpu: 0.0.40
codegen_flags: <defaults>
</compile_context>

<pallas_src>
import jax
import jax.numpy as jnp
import numpy as np
from jax import lax
from jax.experimental import pallas as pl
from jax.experimental.pallas import tpu as pltpu


# ------------------------------ fused GCN-stack + bi-GRU kernel ----------------------------------
def _make_fused_kernel(N, D, H, num_gcn_layers):
    H3 = 3 * H

    def kernel(len_ref,                                           # SMEM (B,) int32 scalar prefetch
               x_ref, adj_ref, nmask_ref,                         # (N,D), (N,N), (N,1)
               gcnw_ref, gcnb_ref,                                # (L,D,D), (L,1,D)
               wih_f_ref, whh_f_ref, bih_f_ref, bhh_f_ref,        # (D,3H),(H,3H),(1,3H),(1,3H)
               wih_b_ref, whh_b_ref, bih_b_ref, bhh_b_ref,
               out_ref,                                           # (N, 2H)
               gi_f_sc, gi_b_sc, out_f_sc, out_b_sc):             # VMEM scratch
        b = pl.program_id(0)
        L = len_ref[b]

        # ---------------- GCN stack (unrolled over layers): residual + ReLU + node mask ----------
        x = x_ref[...].astype(jnp.float32)                        # (N, D)
        adj = adj_ref[...].astype(jnp.float32)                    # (N, N)
        nmask = nmask_ref[...].astype(jnp.float32)                # (N, 1)
        for l in range(num_gcn_layers):
            agg = jnp.dot(adj, x, preferred_element_type=jnp.float32)            # (N, D)
            h = jnp.dot(agg, gcnw_ref[l], preferred_element_type=jnp.float32) + gcnb_ref[l]
            h = jnp.maximum(h, 0.0) * nmask
            x = x + h                                             # dropout = identity (eval)

        # ---------------- GRU: hoist input-gate matmuls out of the time loop ---------------------
        gi_f_sc[...] = (jnp.dot(x, wih_f_ref[...], preferred_element_type=jnp.float32)
                        + bih_f_ref[...])                         # (N, 3H), gate order r,z,n
        gi_b_sc[...] = (jnp.dot(x, wih_b_ref[...], preferred_element_type=jnp.float32)
                        + bih_b_ref[...])

        # padded rows (t >= L) must emit zeros (pack_padded_sequence semantics)
        out_f_sc[...] = jnp.zeros_like(out_f_sc)
        out_b_sc[...] = jnp.zeros_like(out_b_sc)

        h0 = jnp.zeros((1, H), jnp.float32)

        def step(gi, h, whh_ref, bhh_ref):
            # gi: (1, 3H) precomputed input gates; h: (1, H).  PyTorch gate order: r, z, n.
            gh = jnp.dot(h, whh_ref[...], preferred_element_type=jnp.float32) + bhh_ref[...]
            r = jax.nn.sigmoid(gi[:, 0:H] + gh[:, 0:H])
            z = jax.nn.sigmoid(gi[:, H:2 * H] + gh[:, H:2 * H])
            n = jnp.tanh(gi[:, 2 * H:H3] + r * gh[:, 2 * H:H3])
            return (1.0 - z) * n + z * h

        # forward direction: t = 0 .. L-1 (dynamic trip count; no padded-step work)
        def fwd_body(t, h):
            h_new = step(gi_f_sc[pl.ds(t, 1), :], h, whh_f_ref, bhh_f_ref)
            out_f_sc[pl.ds(t, 1), :] = h_new
            return h_new

        lax.fori_loop(0, L, fwd_body, h0)

        # backward direction: t = L-1 .. 0 (starts at last *valid* step)
        def bwd_body(i, h):
            t = L - 1 - i
            h_new = step(gi_b_sc[pl.ds(t, 1), :], h, whh_b_ref, bhh_b_ref)
            out_b_sc[pl.ds(t, 1), :] = h_new
            return h_new

        lax.fori_loop(0, L, bwd_body, h0)

        # single lane-contiguous (N, 2H) block store; no wrapper concatenate
        out_ref[...] = jnp.concatenate(
            [out_f_sc[...], out_b_sc[...]], axis=-1).astype(out_ref.dtype)

    return kernel


# -------------------------------------- SentenceEncoder ------------------------------------------
def sentence_encoder(params, x, mask, node_pos, node_mask, adj_mat):
    del node_pos  # unused by the reference forward as well
    B, N, D = x.shape
    g = params["gru"]
    H = g["whh_f"].shape[0]
    H3 = g["whh_f"].shape[1]
    Lg = params["gcn_w"].shape[0]

    lengths = mask.sum(axis=-1).astype(jnp.int32)                 # (B,)
    nmask3 = node_mask.reshape(B, N, 1).astype(x.dtype)

    kernel = _make_fused_kernel(N, D, H, Lg)
    full3 = lambda i, lens: (0, 0, 0)
    full2 = lambda i, lens: (0, 0)

    out = pl.pallas_call(
        kernel,
        out_shape=jax.ShapeDtypeStruct((B, N, 2 * H), x.dtype),
        grid_spec=pltpu.PrefetchScalarGridSpec(
            num_scalar_prefetch=1,
            grid=(B,),
            in_specs=[
                pl.BlockSpec((None, N, D), lambda i, lens: (i, 0, 0)),
                pl.BlockSpec((None, N, N), lambda i, lens: (i, 0, 0)),
                pl.BlockSpec((None, N, 1), lambda i, lens: (i, 0, 0)),
                pl.BlockSpec((Lg, D, D), full3),
                pl.BlockSpec((Lg, 1, D), full3),
                pl.BlockSpec((D, H3), full2), pl.BlockSpec((H, H3), full2),
                pl.BlockSpec((1, H3), full2), pl.BlockSpec((1, H3), full2),
                pl.BlockSpec((D, H3), full2), pl.BlockSpec((H, H3), full2),
                pl.BlockSpec((1, H3), full2), pl.BlockSpec((1, H3), full2),
            ],
            out_specs=pl.BlockSpec((None, N, 2 * H), lambda i, lens: (i, 0, 0)),
            scratch_shapes=[
                pltpu.VMEM((N, H3), jnp.float32),   # precomputed input gates, forward
                pltpu.VMEM((N, H3), jnp.float32),   # precomputed input gates, backward
                pltpu.VMEM((N, H), jnp.float32),    # forward outputs
                pltpu.VMEM((N, H), jnp.float32),    # backward outputs
            ],
        ),
        # batches are fully independent -> let v7x megacore shard them across TensorCores
        compiler_params=pltpu.CompilerParams(dimension_semantics=("parallel",)),
    )(lengths, x, adj_mat, nmask3,
      params["gcn_w"], params["gcn_b"],
      g["wih_f"], g["whh_f"], g["bih_f"], g["bhh_f"],
      g["wih_b"], g["whh_b"], g["bih_b"], g["bhh_b"])
    return out                                                    # dropout = identity (eval)


# ------------------------------------ pure numpy reference ---------------------------------------
def _reference(params, x, mask, node_mask, adj_mat):
    length = np.asarray(mask.sum(axis=-1)).astype(np.int32)
    x = np.asarray(x, np.float32)
    adj = np.asarray(adj_mat, np.float32)
    nm = np.asarray(node_mask, np.float32)
    gcn_w = np.asarray(params["gcn_w"])
    gcn_b = np.asarray(params["gcn_b"])
    for l in range(gcn_w.shape[0]):
        h = np.einsum("bij,bjd->bid", adj, x)
        h = np.einsum("bid,de->bie", h, gcn_w[l]) + gcn_b[l]
        h = np.maximum(h, 0.0) * nm[..., None]
        x = x + h
    g = {k: np.asarray(v) for k, v in params["gru"].items()}
    B, N, D = x.shape
    H = g["whh_f"].shape[0]

    def sigmoid(v):
        return 1.0 / (1.0 + np.exp(-v))

    def cell(x_t, h, wih, whh, bih, bhh):
        gi = x_t @ wih + bih[0]
        gh = h @ whh + bhh[0]
        r = sigmoid(gi[0:H] + gh[0:H])
        z = sigmoid(gi[H:2 * H] + gh[H:2 * H])
        n = np.tanh(gi[2 * H:3 * H] + r * gh[2 * H:3 * H])
        return (1.0 - z) * n + z * h

    out = np.zeros((B, N, 2 * H), np.float32)
    for bi in range(B):
        L = int(length[bi])
        h = np.zeros((H,), np.float32)
        for t in range(L):
            h = cell(x[bi, t], h, g["wih_f"], g["whh_f"], g["bih_f"], g["bhh_f"])
            out[bi, t, :H] = h
        h = np.zeros((H,), np.float32)
        for t in range(L - 1, -1, -1):
            h = cell(x[bi, t], h, g["wih_b"], g["whh_b"], g["bih_b"], g["bhh_b"])
            out[bi, t, H:] = h
    return out


# --------------------------------------------- main ----------------------------------------------
if __name__ == "__main__":
    B, N, D = 2, 8, 32          # batch, max_num_words, word_dim
    d_model = 32
    H = d_model >> 1            # GRU hidden per direction
    num_gcn_layers = 2

    key = jax.random.PRNGKey(0)
    ks = jax.random.split(key, 16)

    # deterministic synthetic parameters (GRU weights stored gate-concatenated: r|z|n)
    gcn_w = 0.1 * jax.random.normal(ks[0], (num_gcn_layers, D, D), jnp.float32)
    gcn_b = 0.01 * jax.random.normal(ks[1], (num_gcn_layers, 1, D), jnp.float32)
    gru_params = {
        "wih_f": 0.2 * jax.random.normal(ks[4], (D, 3 * H), jnp.float32),
        "whh_f": 0.2 * jax.random.normal(ks[5], (H, 3 * H), jnp.float32),
        "bih_f": 0.05 * jax.random.normal(ks[6], (1, 3 * H), jnp.float32),
        "bhh_f": 0.05 * jax.random.normal(ks[7], (1, 3 * H), jnp.float32),
        "wih_b": 0.2 * jax.random.normal(ks[8], (D, 3 * H), jnp.float32),
        "whh_b": 0.2 * jax.random.normal(ks[9], (H, 3 * H), jnp.float32),
        "bih_b": 0.05 * jax.random.normal(ks[10], (1, 3 * H), jnp.float32),
        "bhh_b": 0.05 * jax.random.normal(ks[11], (1, 3 * H), jnp.float32),
    }
    params = {"gcn_w": gcn_w, "gcn_b": gcn_b, "gru": gru_params}

    # deterministic inputs
    x = jax.random.normal(ks[12], (B, N, D), jnp.float32)
    lengths = jnp.array([N, 5], jnp.int32)
    mask = (jnp.arange(N)[None, :] < lengths[:, None]).astype(jnp.float32)        # [B, N]
    node_mask = mask
    node_pos = jnp.zeros((B, N), jnp.int32)                                        # unused in forward
    raw_adj = (jax.random.uniform(ks[13], (B, N, N)) > 0.5).astype(jnp.float32)
    raw_adj = raw_adj + jnp.eye(N)[None]                                           # self loops
    raw_adj = raw_adj * mask[:, :, None] * mask[:, None, :]
    adj_mat = raw_adj / jnp.maximum(raw_adj.sum(-1, keepdims=True), 1.0)           # row-normalized

    out = sentence_encoder(params, x, mask, node_pos, node_mask, adj_mat)
    out = jax.block_until_ready(out)

    ref = _reference(params, x, mask, node_mask, adj_mat)
    np.testing.assert_allclose(np.asarray(out), ref, rtol=2e-2, atol=2e-2)

    print("KERNEL_OK")
</pallas_src>

<mosaic_0001>
module attributes {stable_mosaic.version = 11 : i64} {
  func.func @kernel(%arg0: i32, %arg1: memref<2xi32, #tpu.memory_space<smem>>, %arg2: memref<1x8x32xf32, #tpu.memory_space<vmem>>, %arg3: memref<1x8x8xf32, #tpu.memory_space<vmem>>, %arg4: memref<1x8x1xf32, #tpu.memory_space<vmem>>, %arg5: memref<2x32x32xf32, #tpu.memory_space<vmem>>, %arg6: memref<2x1x32xf32, #tpu.memory_space<vmem>>, %arg7: memref<32x48xf32, #tpu.memory_space<vmem>>, %arg8: memref<16x48xf32, #tpu.memory_space<vmem>>, %arg9: memref<1x48xf32, #tpu.memory_space<vmem>>, %arg10: memref<1x48xf32, #tpu.memory_space<vmem>>, %arg11: memref<32x48xf32, #tpu.memory_space<vmem>>, %arg12: memref<16x48xf32, #tpu.memory_space<vmem>>, %arg13: memref<1x48xf32, #tpu.memory_space<vmem>>, %arg14: memref<1x48xf32, #tpu.memory_space<vmem>>, %arg15: memref<1x8x32xf32, #tpu.memory_space<vmem>>, %arg16: memref<8x48xf32, #tpu.memory_space<vmem>>, %arg17: memref<8x48xf32, #tpu.memory_space<vmem>>, %arg18: memref<8x16xf32, #tpu.memory_space<vmem>>, %arg19: memref<8x16xf32, #tpu.memory_space<vmem>>) attributes {dimension_semantics = [#tpu.dimension_semantics<parallel>], iteration_bounds = array<i64: 2>, scalar_prefetch = 1 : i64, scratch_operands = 4 : i64, tpu.core_type = #tpu.core_type<tc>, window_params = [{transform_indices = @transform_0, window_bounds = array<i64: 1, 8, 32>}, {transform_indices = @transform_1, window_bounds = array<i64: 1, 8, 8>}, {transform_indices = @transform_2, window_bounds = array<i64: 1, 8, 1>}, {pipeline_mode = #tpu.pipeline_mode<synchronous>, transform_indices = @transform_3, window_bounds = array<i64: 2, 32, 32>}, {pipeline_mode = #tpu.pipeline_mode<synchronous>, transform_indices = @transform_4, window_bounds = array<i64: 2, 1, 32>}, {pipeline_mode = #tpu.pipeline_mode<synchronous>, transform_indices = @transform_5, window_bounds = array<i64: 32, 48>}, {pipeline_mode = #tpu.pipeline_mode<synchronous>, transform_indices = @transform_6, window_bounds = array<i64: 16, 48>}, {pipeline_mode = #tpu.pipeline_mode<synchronous>, transform_indices = @transform_7, window_bounds = array<i64: 1, 48>}, {pipeline_mode = #tpu.pipeline_mode<synchronous>, transform_indices = @transform_8, window_bounds = array<i64: 1, 48>}, {pipeline_mode = #tpu.pipeline_mode<synchronous>, transform_indices = @transform_9, window_bounds = array<i64: 32, 48>}, {pipeline_mode = #tpu.pipeline_mode<synchronous>, transform_indices = @transform_10, window_bounds = array<i64: 16, 48>}, {pipeline_mode = #tpu.pipeline_mode<synchronous>, transform_indices = @transform_11, window_bounds = array<i64: 1, 48>}, {pipeline_mode = #tpu.pipeline_mode<synchronous>, transform_indices = @transform_12, window_bounds = array<i64: 1, 48>}, {transform_indices = @transform_13, window_bounds = array<i64: 1, 8, 32>}]} {
    %0 = arith.index_cast %arg0 : i32 to index
    %1 = memref.load %arg1[%0] : memref<2xi32, #tpu.memory_space<smem>>
    %c0 = arith.constant 0 : index
    %c0_0 = arith.constant 0 : index
    %c0_1 = arith.constant 0 : index
    %2 = vector.load %arg2[%c0, %c0_0, %c0_1] : memref<1x8x32xf32, #tpu.memory_space<vmem>>, vector<1x8x32xf32>
    %3 = vector.shape_cast %2 : vector<1x8x32xf32> to vector<8x32xf32>
    %c0_2 = arith.constant 0 : index
    %c0_3 = arith.constant 0 : index
    %c0_4 = arith.constant 0 : index
    %4 = vector.load %arg3[%c0_2, %c0_3, %c0_4] : memref<1x8x8xf32, #tpu.memory_space<vmem>>, vector<1x8x8xf32>
    %5 = vector.shape_cast %4 : vector<1x8x8xf32> to vector<8x8xf32>
    %c0_5 = arith.constant 0 : index
    %c0_6 = arith.constant 0 : index
    %c0_7 = arith.constant 0 : index
    %6 = vector.load %arg4[%c0_5, %c0_6, %c0_7] : memref<1x8x1xf32, #tpu.memory_space<vmem>>, vector<1x8x1xf32>
    %7 = vector.shape_cast %6 : vector<1x8x1xf32> to vector<8x1xf32>
    %cst = arith.constant dense<0.000000e+00> : vector<8x32xf32>
    %8 = tpu.matmul %5, %3, %cst {dimension_numbers = #tpu.dot_dimension_numbers<[1], [0], [0], [1], [0, 0, 1, 1], [], []>} : vector<8x8xf32>, vector<8x32xf32>, vector<8x32xf32> -> vector<8x32xf32>
    %c0_8 = arith.constant 0 : index
    %c0_9 = arith.constant 0 : index
    %c0_10 = arith.constant 0 : index
    %9 = vector.load %arg5[%c0_8, %c0_9, %c0_10] : memref<2x32x32xf32, #tpu.memory_space<vmem>>, vector<1x32x32xf32>
    %10 = vector.shape_cast %9 : vector<1x32x32xf32> to vector<32x32xf32>
    %cst_11 = arith.constant dense<0.000000e+00> : vector<8x32xf32>
    %11 = tpu.matmul %8, %10, %cst_11 {dimension_numbers = #tpu.dot_dimension_numbers<[1], [0], [0], [1], [0, 0, 1, 1], [], []>} : vector<8x32xf32>, vector<32x32xf32>, vector<8x32xf32> -> vector<8x32xf32>
    %c0_12 = arith.constant 0 : index
    %c0_13 = arith.constant 0 : index
    %c0_14 = arith.constant 0 : index
    %12 = vector.load %arg6[%c0_12, %c0_13, %c0_14] : memref<2x1x32xf32, #tpu.memory_space<vmem>>, vector<1x1x32xf32>
    %13 = vector.shape_cast %12 : vector<1x1x32xf32> to vector<1x32xf32>
    %14 = vector.broadcast %13 : vector<1x32xf32> to vector<8x32xf32>
    %15 = arith.addf %11, %14 : vector<8x32xf32>
    %cst_15 = arith.constant 0.000000e+00 : f32
    %16 = vector.broadcast %cst_15 : f32 to vector<8x32xf32>
    %17 = arith.maximumf %15, %16 : vector<8x32xf32>
    %18 = vector.broadcast %7 : vector<8x1xf32> to vector<8x32xf32>
    %19 = arith.mulf %17, %18 : vector<8x32xf32>
    %20 = arith.addf %3, %19 : vector<8x32xf32>
    %cst_16 = arith.constant dense<0.000000e+00> : vector<8x32xf32>
    %21 = tpu.matmul %5, %20, %cst_16 {dimension_numbers = #tpu.dot_dimension_numbers<[1], [0], [0], [1], [0, 0, 1, 1], [], []>} : vector<8x8xf32>, vector<8x32xf32>, vector<8x32xf32> -> vector<8x32xf32>
    %c1 = arith.constant 1 : index
    %c0_17 = arith.constant 0 : index
    %c0_18 = arith.constant 0 : index
    %22 = vector.load %arg5[%c1, %c0_17, %c0_18] : memref<2x32x32xf32, #tpu.memory_space<vmem>>, vector<1x32x32xf32>
    %23 = vector.shape_cast %22 : vector<1x32x32xf32> to vector<32x32xf32>
    %cst_19 = arith.constant dense<0.000000e+00> : vector<8x32xf32>
    %24 = tpu.matmul %21, %23, %cst_19 {dimension_numbers = #tpu.dot_dimension_numbers<[1], [0], [0], [1], [0, 0, 1, 1], [], []>} : vector<8x32xf32>, vector<32x32xf32>, vector<8x32xf32> -> vector<8x32xf32>
    %c1_20 = arith.constant 1 : index
    %c0_21 = arith.constant 0 : index
    %c0_22 = arith.constant 0 : index
    %25 = vector.load %arg6[%c1_20, %c0_21, %c0_22] : memref<2x1x32xf32, #tpu.memory_space<vmem>>, vector<1x1x32xf32>
    %26 = vector.shape_cast %25 : vector<1x1x32xf32> to vector<1x32xf32>
    %27 = vector.broadcast %26 : vector<1x32xf32> to vector<8x32xf32>
    %28 = arith.addf %24, %27 : vector<8x32xf32>
    %cst_23 = arith.constant 0.000000e+00 : f32
    %29 = vector.broadcast %cst_23 : f32 to vector<8x32xf32>
    %30 = arith.maximumf %28, %29 : vector<8x32xf32>
    %31 = vector.broadcast %7 : vector<8x1xf32> to vector<8x32xf32>
    %32 = arith.mulf %30, %31 : vector<8x32xf32>
    %33 = arith.addf %20, %32 : vector<8x32xf32>
    %c0_24 = arith.constant 0 : index
    %c0_25 = arith.constant 0 : index
    %34 = vector.load %arg7[%c0_24, %c0_25] : memref<32x48xf32, #tpu.memory_space<vmem>>, vector<32x48xf32>
    %cst_26 = arith.constant dense<0.000000e+00> : vector<8x48xf32>
    %35 = tpu.matmul %33, %34, %cst_26 {dimension_numbers = #tpu.dot_dimension_numbers<[1], [0], [0], [1], [0, 0, 1, 1], [], []>} : vector<8x32xf32>, vector<32x48xf32>, vector<8x48xf32> -> vector<8x48xf32>
    %c0_27 = arith.constant 0 : index
    %c0_28 = arith.constant 0 : index
    %36 = vector.load %arg9[%c0_27, %c0_28] : memref<1x48xf32, #tpu.memory_space<vmem>>, vector<1x48xf32>
    %37 = vector.broadcast %36 : vector<1x48xf32> to vector<8x48xf32>
    %38 = arith.addf %35, %37 : vector<8x48xf32>
    %c0_29 = arith.constant 0 : index
    %c0_30 = arith.constant 0 : index
    %39 = vector.load %arg16[%c0_29, %c0_30] : memref<8x48xf32, #tpu.memory_space<vmem>>, vector<8x48xf32>
    tpu.vector_store %arg16[%c0_29, %c0_30], %38 {strides = array<i32>} : memref<8x48xf32, #tpu.memory_space<vmem>>, vector<8x48xf32>,
    %c0_31 = arith.constant 0 : index
    %c0_32 = arith.constant 0 : index
    %40 = vector.load %arg11[%c0_31, %c0_32] : memref<32x48xf32, #tpu.memory_space<vmem>>, vector<32x48xf32>
    %cst_33 = arith.constant dense<0.000000e+00> : vector<8x48xf32>
    %41 = tpu.matmul %33, %40, %cst_33 {dimension_numbers = #tpu.dot_dimension_numbers<[1], [0], [0], [1], [0, 0, 1, 1], [], []>} : vector<8x32xf32>, vector<32x48xf32>, vector<8x48xf32> -> vector<8x48xf32>
    %c0_34 = arith.constant 0 : index
    %c0_35 = arith.constant 0 : index
    %42 = vector.load %arg13[%c0_34, %c0_35] : memref<1x48xf32, #tpu.memory_space<vmem>>, vector<1x48xf32>
    %43 = vector.broadcast %42 : vector<1x48xf32> to vector<8x48xf32>
    %44 = arith.addf %41, %43 : vector<8x48xf32>
    %c0_36 = arith.constant 0 : index
    %c0_37 = arith.constant 0 : index
    %45 = vector.load %arg17[%c0_36, %c0_37] : memref<8x48xf32, #tpu.memory_space<vmem>>, vector<8x48xf32>
    tpu.vector_store %arg17[%c0_36, %c0_37], %44 {strides = array<i32>} : memref<8x48xf32, #tpu.memory_space<vmem>>, vector<8x48xf32>,
    %cst_38 = arith.constant 0.000000e+00 : f32
    %46 = vector.broadcast %cst_38 : f32 to vector<8x16xf32>
    %c0_39 = arith.constant 0 : index
    %c0_40 = arith.constant 0 : index
    %47 = vector.load %arg18[%c0_39, %c0_40] : memref<8x16xf32, #tpu.memory_space<vmem>>, vector<8x16xf32>
    tpu.vector_store %arg18[%c0_39, %c0_40], %46 {strides = array<i32>} : memref<8x16xf32, #tpu.memory_space<vmem>>, vector<8x16xf32>,
    %cst_41 = arith.constant 0.000000e+00 : f32
    %48 = vector.broadcast %cst_41 : f32 to vector<8x16xf32>
    %c0_42 = arith.constant 0 : index
    %c0_43 = arith.constant 0 : index
    %49 = vector.load %arg19[%c0_42, %c0_43] : memref<8x16xf32, #tpu.memory_space<vmem>>, vector<8x16xf32>
    tpu.vector_store %arg19[%c0_42, %c0_43], %48 {strides = array<i32>} : memref<8x16xf32, #tpu.memory_space<vmem>>, vector<8x16xf32>,
    %cst_44 = arith.constant 0.000000e+00 : f32
    %50 = vector.broadcast %cst_44 : f32 to vector<1x16xf32>
    %c0_i32 = arith.constant 0 : i32
    %51 = arith.subi %1, %c0_i32 : i32
    %52 = arith.addi %c0_i32, %51 : i32
    %c1_i32 = arith.constant 1 : i32
    %53 = scf.for %arg20 = %c0_i32 to %52 step %c1_i32 iter_args(%arg21 = %50) -> (vector<1x16xf32>)  : i32 {
      %63 = arith.index_cast %arg20 : i32 to index
      %c0_54 = arith.constant 0 : index
      %64 = vector.load %arg16[%63, %c0_54] : memref<8x48xf32, #tpu.memory_space<vmem>>, vector<1x48xf32>
      %c0_55 = arith.constant 0 : index
      %c0_56 = arith.constant 0 : index
      %65 = vector.load %arg8[%c0_55, %c0_56] : memref<16x48xf32, #tpu.memory_space<vmem>>, vector<16x48xf32>
      %cst_57 = arith.constant dense<0.000000e+00> : vector<1x48xf32>
      %66 = tpu.matmul %arg21, %65, %cst_57 {dimension_numbers = #tpu.dot_dimension_numbers<[1], [0], [0], [1], [0, 0, 1, 1], [], []>} : vector<1x16xf32>, vector<16x48xf32>, vector<1x48xf32> -> vector<1x48xf32>
      %c0_58 = arith.constant 0 : index
      %c0_59 = arith.constant 0 : index
      %67 = vector.load %arg10[%c0_58, %c0_59] : memref<1x48xf32, #tpu.memory_space<vmem>>, vector<1x48xf32>
      %68 = arith.addf %66, %67 : vector<1x48xf32>
      %69 = vector.extract_strided_slice %64 {offsets = [0, 0], sizes = [1, 16], strides = [1, 1]} : vector<1x48xf32> to vector<1x16xf32>
      %70 = vector.extract_strided_slice %68 {offsets = [0, 0], sizes = [1, 16], strides = [1, 1]} : vector<1x48xf32> to vector<1x16xf32>
      %71 = arith.addf %69, %70 : vector<1x16xf32>
      %72 = arith.negf %71 : vector<1x16xf32>
      %73 = math.exp %72 : vector<1x16xf32>
      %cst_60 = arith.constant 1.000000e+00 : f32
      %74 = vector.broadcast %cst_60 : f32 to vector<1x16xf32>
      %75 = arith.addf %74, %73 : vector<1x16xf32>
      %76 = arith.divf %74, %75 : vector<1x16xf32>
      %77 = vector.extract_strided_slice %64 {offsets = [0, 16], sizes = [1, 16], strides = [1, 1]} : vector<1x48xf32> to vector<1x16xf32>
      %78 = vector.extract_strided_slice %68 {offsets = [0, 16], sizes = [1, 16], strides = [1, 1]} : vector<1x48xf32> to vector<1x16xf32>
      %79 = arith.addf %77, %78 : vector<1x16xf32>
      %80 = arith.negf %79 : vector<1x16xf32>
      %81 = math.exp %80 : vector<1x16xf32>
      %cst_61 = arith.constant 1.000000e+00 : f32
      %82 = vector.broadcast %cst_61 : f32 to vector<1x16xf32>
      %83 = arith.addf %82, %81 : vector<1x16xf32>
      %84 = arith.divf %82, %83 : vector<1x16xf32>
      %85 = vector.extract_strided_slice %64 {offsets = [0, 32], sizes = [1, 16], strides = [1, 1]} : vector<1x48xf32> to vector<1x16xf32>
      %86 = vector.extract_strided_slice %68 {offsets = [0, 32], sizes = [1, 16], strides = [1, 1]} : vector<1x48xf32> to vector<1x16xf32>
      %87 = arith.mulf %76, %86 : vector<1x16xf32>
      %88 = arith.addf %85, %87 : vector<1x16xf32>
      %89 = math.tanh %88 : vector<1x16xf32>
      %cst_62 = arith.constant 1.000000e+00 : f32
      %90 = vector.broadcast %cst_62 : f32 to vector<1x16xf32>
      %91 = arith.subf %90, %84 : vector<1x16xf32>
      %92 = arith.mulf %91, %89 : vector<1x16xf32>
      %93 = arith.mulf %84, %arg21 : vector<1x16xf32>
      %94 = arith.addf %92, %93 : vector<1x16xf32>
      %95 = arith.index_cast %arg20 : i32 to index
      %c0_63 = arith.constant 0 : index
      %96 = vector.load %arg18[%95, %c0_63] : memref<8x16xf32, #tpu.memory_space<vmem>>, vector<1x16xf32>
      tpu.vector_store %arg18[%95, %c0_63], %94 {strides = array<i32>} : memref<8x16xf32, #tpu.memory_space<vmem>>, vector<1x16xf32>,
      scf.yield %94 : vector<1x16xf32>
    }
    %c0_i32_45 = arith.constant 0 : i32
    %54 = arith.subi %1, %c0_i32_45 : i32
    %55 = arith.addi %c0_i32_45, %54 : i32
    %c1_i32_46 = arith.constant 1 : i32
    %56 = scf.for %arg20 = %c0_i32_45 to %55 step %c1_i32_46 iter_args(%arg21 = %50) -> (vector<1x16xf32>)  : i32 {
      %c1_i32_54 = arith.constant 1 : i32
      %63 = arith.subi %1, %c1_i32_54 : i32
      %64 = arith.subi %63, %arg20 : i32
      %65 = arith.index_cast %64 : i32 to index
      %c0_55 = arith.constant 0 : index
      %66 = vector.load %arg17[%65, %c0_55] : memref<8x48xf32, #tpu.memory_space<vmem>>, vector<1x48xf32>
      %c0_56 = arith.constant 0 : index
      %c0_57 = arith.constant 0 : index
      %67 = vector.load %arg12[%c0_56, %c0_57] : memref<16x48xf32, #tpu.memory_space<vmem>>, vector<16x48xf32>
      %cst_58 = arith.constant dense<0.000000e+00> : vector<1x48xf32>
      %68 = tpu.matmul %arg21, %67, %cst_58 {dimension_numbers = #tpu.dot_dimension_numbers<[1], [0], [0], [1], [0, 0, 1, 1], [], []>} : vector<1x16xf32>, vector<16x48xf32>, vector<1x48xf32> -> vector<1x48xf32>
      %c0_59 = arith.constant 0 : index
      %c0_60 = arith.constant 0 : index
      %69 = vector.load %arg14[%c0_59, %c0_60] : memref<1x48xf32, #tpu.memory_space<vmem>>, vector<1x48xf32>
      %70 = arith.addf %68, %69 : vector<1x48xf32>
      %71 = vector.extract_strided_slice %66 {offsets = [0, 0], sizes = [1, 16], strides = [1, 1]} : vector<1x48xf32> to vector<1x16xf32>
      %72 = vector.extract_strided_slice %70 {offsets = [0, 0], sizes = [1, 16], strides = [1, 1]} : vector<1x48xf32> to vector<1x16xf32>
      %73 = arith.addf %71, %72 : vector<1x16xf32>
      %74 = arith.negf %73 : vector<1x16xf32>
      %75 = math.exp %74 : vector<1x16xf32>
      %cst_61 = arith.constant 1.000000e+00 : f32
      %76 = vector.broadcast %cst_61 : f32 to vector<1x16xf32>
      %77 = arith.addf %76, %75 : vector<1x16xf32>
      %78 = arith.divf %76, %77 : vector<1x16xf32>
      %79 = vector.extract_strided_slice %66 {offsets = [0, 16], sizes = [1, 16], strides = [1, 1]} : vector<1x48xf32> to vector<1x16xf32>
      %80 = vector.extract_strided_slice %70 {offsets = [0, 16], sizes = [1, 16], strides = [1, 1]} : vector<1x48xf32> to vector<1x16xf32>
      %81 = arith.addf %79, %80 : vector<1x16xf32>
      %82 = arith.negf %81 : vector<1x16xf32>
      %83 = math.exp %82 : vector<1x16xf32>
      %cst_62 = arith.constant 1.000000e+00 : f32
      %84 = vector.broadcast %cst_62 : f32 to vector<1x16xf32>
      %85 = arith.addf %84, %83 : vector<1x16xf32>
      %86 = arith.divf %84, %85 : vector<1x16xf32>
      %87 = vector.extract_strided_slice %66 {offsets = [0, 32], sizes = [1, 16], strides = [1, 1]} : vector<1x48xf32> to vector<1x16xf32>
      %88 = vector.extract_strided_slice %70 {offsets = [0, 32], sizes = [1, 16], strides = [1, 1]} : vector<1x48xf32> to vector<1x16xf32>
      %89 = arith.mulf %78, %88 : vector<1x16xf32>
      %90 = arith.addf %87, %89 : vector<1x16xf32>
      %91 = math.tanh %90 : vector<1x16xf32>
      %cst_63 = arith.constant 1.000000e+00 : f32
      %92 = vector.broadcast %cst_63 : f32 to vector<1x16xf32>
      %93 = arith.subf %92, %86 : vector<1x16xf32>
      %94 = arith.mulf %93, %91 : vector<1x16xf32>
      %95 = arith.mulf %86, %arg21 : vector<1x16xf32>
      %96 = arith.addf %94, %95 : vector<1x16xf32>
      %97 = arith.index_cast %64 : i32 to index
      %c0_64 = arith.constant 0 : index
      %98 = vector.load %arg19[%97, %c0_64] : memref<8x16xf32, #tpu.memory_space<vmem>>, vector<1x16xf32>
      tpu.vector_store %arg19[%97, %c0_64], %96 {strides = array<i32>} : memref<8x16xf32, #tpu.memory_space<vmem>>, vector<1x16xf32>,
      scf.yield %96 : vector<1x16xf32>
    }
    %c0_47 = arith.constant 0 : index
    %c0_48 = arith.constant 0 : index
    %57 = vector.load %arg18[%c0_47, %c0_48] : memref<8x16xf32, #tpu.memory_space<vmem>>, vector<8x16xf32>
    %c0_49 = arith.constant 0 : index
    %c0_50 = arith.constant 0 : index
    %58 = vector.load %arg19[%c0_49, %c0_50] : memref<8x16xf32, #tpu.memory_space<vmem>>, vector<8x16xf32>
    %59 = tpu.concatenate %57, %58 in 1 : vector<8x16xf32>, vector<8x16xf32> -> vector<8x32xf32>
    %c0_51 = arith.constant 0 : index
    %c0_52 = arith.constant 0 : index
    %c0_53 = arith.constant 0 : index
    %60 = vector.load %arg15[%c0_51, %c0_52, %c0_53] : memref<1x8x32xf32, #tpu.memory_space<vmem>>, vector<1x8x32xf32>
    %61 = vector.shape_cast %60 : vector<1x8x32xf32> to vector<8x32xf32>
    %62 = vector.shape_cast %59 : vector<8x32xf32> to vector<1x8x32xf32>
    tpu.vector_store %arg15[%c0_51, %c0_52, %c0_53], %62 {strides = array<i32>} : memref<1x8x32xf32, #tpu.memory_space<vmem>>, vector<1x8x32xf32>,
    return
  }
  func.func @transform_0(%arg0: i32, %arg1: memref<2xi32, #tpu.memory_space<smem>>) -> (i32, i32, i32) {
    %c0_i32 = arith.constant 0 : i32
    %c0_i32_0 = arith.constant 0 : i32
    %c0_i32_1 = arith.constant 0 : i32
    return %arg0, %c0_i32, %c0_i32_0 : i32, i32, i32
  }
  func.func @transform_1(%arg0: i32, %arg1: memref<2xi32, #tpu.memory_space<smem>>) -> (i32, i32, i32) {
    %c0_i32 = arith.constant 0 : i32
    %c0_i32_0 = arith.constant 0 : i32
    %c0_i32_1 = arith.constant 0 : i32
    return %arg0, %c0_i32, %c0_i32_0 : i32, i32, i32
  }
  func.func @transform_2(%arg0: i32, %arg1: memref<2xi32, #tpu.memory_space<smem>>) -> (i32, i32, i32) {
    %c0_i32 = arith.constant 0 : i32
    %c0_i32_0 = arith.constant 0 : i32
    %c0_i32_1 = arith.constant 0 : i32
    return %arg0, %c0_i32, %c0_i32_0 : i32, i32, i32
  }
  func.func @transform_3(%arg0: i32, %arg1: memref<2xi32, #tpu.memory_space<smem>>) -> (i32, i32, i32) {
    %c0_i32 = arith.constant 0 : i32
    %c0_i32_0 = arith.constant 0 : i32
    %c0_i32_1 = arith.constant 0 : i32
    %c0_i32_2 = arith.constant 0 : i32
    return %c0_i32, %c0_i32_0, %c0_i32_1 : i32, i32, i32
  }
  func.func @transform_4(%arg0: i32, %arg1: memref<2xi32, #tpu.memory_space<smem>>) -> (i32, i32, i32) {
    %c0_i32 = arith.constant 0 : i32
    %c0_i32_0 = arith.constant 0 : i32
    %c0_i32_1 = arith.constant 0 : i32
    %c0_i32_2 = arith.constant 0 : i32
    return %c0_i32, %c0_i32_0, %c0_i32_1 : i32, i32, i32
  }
  func.func @transform_5(%arg0: i32, %arg1: memref<2xi32, #tpu.memory_space<smem>>) -> (i32, i32) {
    %c0_i32 = arith.constant 0 : i32
    %c0_i32_0 = arith.constant 0 : i32
    %c0_i32_1 = arith.constant 0 : i32
    return %c0_i32, %c0_i32_0 : i32, i32
  }
  func.func @transform_6(%arg0: i32, %arg1: memref<2xi32, #tpu.memory_space<smem>>) -> (i32, i32) {
    %c0_i32 = arith.constant 0 : i32
    %c0_i32_0 = arith.constant 0 : i32
    %c0_i32_1 = arith.constant 0 : i32
    return %c0_i32, %c0_i32_0 : i32, i32
  }
  func.func @transform_7(%arg0: i32, %arg1: memref<2xi32, #tpu.memory_space<smem>>) -> (i32, i32) {
    %c0_i32 = arith.constant 0 : i32
    %c0_i32_0 = arith.constant 0 : i32
    %c0_i32_1 = arith.constant 0 : i32
    return %c0_i32, %c0_i32_0 : i32, i32
  }
  func.func @transform_8(%arg0: i32, %arg1: memref<2xi32, #tpu.memory_space<smem>>) -> (i32, i32) {
    %c0_i32 = arith.constant 0 : i32
    %c0_i32_0 = arith.constant 0 : i32
    %c0_i32_1 = arith.constant 0 : i32
    return %c0_i32, %c0_i32_0 : i32, i32
  }
  func.func @transform_9(%arg0: i32, %arg1: memref<2xi32, #tpu.memory_space<smem>>) -> (i32, i32) {
    %c0_i32 = arith.constant 0 : i32
    %c0_i32_0 = arith.constant 0 : i32
    %c0_i32_1 = arith.constant 0 : i32
    return %c0_i32, %c0_i32_0 : i32, i32
  }
  func.func @transform_10(%arg0: i32, %arg1: memref<2xi32, #tpu.memory_space<smem>>) -> (i32, i32) {
    %c0_i32 = arith.constant 0 : i32
    %c0_i32_0 = arith.constant 0 : i32
    %c0_i32_1 = arith.constant 0 : i32
    return %c0_i32, %c0_i32_0 : i32, i32
  }
  func.func @transform_11(%arg0: i32, %arg1: memref<2xi32, #tpu.memory_space<smem>>) -> (i32, i32) {
    %c0_i32 = arith.constant 0 : i32
    %c0_i32_0 = arith.constant 0 : i32
    %c0_i32_1 = arith.constant 0 : i32
    return %c0_i32, %c0_i32_0 : i32, i32
  }
  func.func @transform_12(%arg0: i32, %arg1: memref<2xi32, #tpu.memory_space<smem>>) -> (i32, i32) {
    %c0_i32 = arith.constant 0 : i32
    %c0_i32_0 = arith.constant 0 : i32
    %c0_i32_1 = arith.constant 0 : i32
    return %c0_i32, %c0_i32_0 : i32, i32
  }
  func.func @transform_13(%arg0: i32, %arg1: memref<2xi32, #tpu.memory_space<smem>>) -> (i32, i32, i32) {
    %c0_i32 = arith.constant 0 : i32
    %c0_i32_0 = arith.constant 0 : i32
    %c0_i32_1 = arith.constant 0 : i32
    return %arg0, %c0_i32, %c0_i32_0 : i32, i32, i32
  }
}

</mosaic_0001>

<llo_original>
// kernel: tpu_custom_call.1
$region0: #{tpu_custom_call.1}
  #allocation0 [shape = 'u32[]', space=smem, size = 0x4, offset = 0x4, fixed_abs, tag = 'smem constant byte address 0x4 - core index']
  #allocation1 [shape = 'u32[144,128]{1,0:T(1,128)}', space=vmem, size = 0x12000, scoped, tag = 'internal scratch']
  #allocation2 [shape = 'f32[8,48]{1,0:T(8,128)}', space=vmem, size = 0x1000, scoped, tag = 'scratch operand']
  #allocation3 [shape = 'f32[8,48]{1,0:T(8,128)}', space=vmem, size = 0x1000, scoped, tag = 'scratch operand']
  #allocation4 [shape = 'f32[8,16]{1,0:T(8,128)}', space=vmem, size = 0x1000, scoped, tag = 'scratch operand']
  #allocation5 [shape = 'f32[8,16]{1,0:T(8,128)}', space=vmem, size = 0x1000, scoped, tag = 'scratch operand']
  #allocation6 [shape = 's32[1]{0}', space=sflag, size = 0x4, scoped, tag = 'scoped memory for tpu_custom_call.1']
  #allocation7 [shape = 'u8[512]{0}', space=smem, size = 0x200, scoped, tag = 'prefetched SMEM operand 0']
  %s0 = inlined_call_operand.hbm [shape: s32[2], index: 0, kind: input, shape index: {}]
  %s1 = inlined_call_operand.hbm [shape: f32[2,8,32], index: 1, kind: input, shape index: {}]
  %s2 = inlined_call_operand.hbm [shape: f32[2,8,8], index: 2, kind: input, shape index: {}]
  %s3 = inlined_call_operand.vmem [shape: f32[2,8,1], index: 3, kind: input, shape index: {}]
  %s4 = inlined_call_operand.hbm [shape: f32[2,32,32], index: 4, kind: input, shape index: {}]
  %s5 = inlined_call_operand.hbm [shape: f32[2,1,32], index: 5, kind: input, shape index: {}]
  %s6 = inlined_call_operand.vmem [shape: f32[32,48], index: 6, kind: input, shape index: {}]
  %s7 = inlined_call_operand.hbm [shape: f32[16,48], index: 7, kind: input, shape index: {}]
  %s8 = inlined_call_operand.hbm [shape: f32[1,48], index: 8, kind: input, shape index: {}]
  %s9 = inlined_call_operand.vmem [shape: f32[1,48], index: 9, kind: input, shape index: {}]
  %s10 = inlined_call_operand.hbm [shape: f32[32,48], index: 10, kind: input, shape index: {}]
  %s11 = inlined_call_operand.vmem [shape: f32[16,48], index: 11, kind: input, shape index: {}]
  %s12 = inlined_call_operand.vmem [shape: f32[1,48], index: 12, kind: input, shape index: {}]
  %s13 = inlined_call_operand.vmem [shape: f32[1,48], index: 13, kind: input, shape index: {}]
  %s14 = inlined_call_operand.hbm [shape: f32[2,8,32], index: 14, kind: output, shape index: {}]
  %s15 = sld [smem:[#allocation0]]
  $region127: #{tpu_custom_call.1} parent=0
    _
  %s17 = ssub.s32 1, %s15
  %s18 = scalar_select 0, %s17, %s15
  %20 = dma.hbm_to_smem %s0, 16, [#allocation7], [#allocation6]
  %21 = dma.done [#allocation6], 16
  %22 = sfence
  $region1: #{tpu_custom_call.1} parent=0
    #allocation8 [shape = 'u8[8192]{0}', space=vmem, size = 0x2000, scoped, tag = 'input window, operand 1']
    #allocation9 [shape = 's32[2]{0}', space=sflag, size = 0x8, scoped, tag = 'scoped memory for tpu_custom_call.1']
    #allocation10 [shape = 's32[2]{0}', space=sflag, size = 0x8, scoped, tag = 'scoped memory for tpu_custom_call.1']
    #allocation11 [shape = 'u8[8192]{0}', space=vmem, size = 0x2000, scoped, tag = 'input window, operand 2']
    #allocation12 [shape = 's32[2]{0}', space=sflag, size = 0x8, scoped, tag = 'scoped memory for tpu_custom_call.1']
    #allocation13 [shape = 'u8[32768]{0}', space=vmem, size = 0x8000, scoped, tag = 'input window, operand 4, single buffered']
    #allocation14 [shape = 'u8[1024]{0}', space=vmem, size = 0x400, scoped, tag = 'input window, operand 5, single buffered']
    #allocation15 [shape = 's32[1]{0}', space=sflag, size = 0x4, scoped, tag = 'scoped memory for tpu_custom_call.1']
    #allocation16 [shape = 'u8[8192]{0}', space=vmem, size = 0x2000, scoped, tag = 'input window, operand 7, single buffered']
    #allocation17 [shape = 'u8[512]{0}', space=vmem, size = 0x400, scoped, tag = 'input window, operand 8, single buffered']
    #allocation18 [shape = 's32[1]{0}', space=sflag, size = 0x4, scoped, tag = 'scoped memory for tpu_custom_call.1']
    #allocation19 [shape = 'u8[16384]{0}', space=vmem, size = 0x4000, scoped, tag = 'input window, operand 10, single buffered']
    #allocation20 [shape = 'u8[8192]{0}', space=vmem, size = 0x2000, scoped, tag = 'output window, operand 0']
    %23 = vsyncpa [#allocation9], 0
    %s24 = scalar_lea.sflag [#allocation9], 1
    %25 = vsyncpa %s24, 0
    %26 = vsyncpa [#allocation12], 0
    %s27 = scalar_lea.sflag [#allocation12], 1
    %28 = vsyncpa %s27, 0
    %29 = vsyncpa [#allocation15], 0
    %30 = vsyncpa [#allocation18], 0
    %31 = vsyncpa [#allocation10], 0
    %s32 = scalar_lea.sflag [#allocation10], 1
    %33 = vsyncpa %s32, 0
    loop: start=0, step=1, limit=4
    $region2: #{tpu_custom_call.1} parent=1 // loop_pre_header
      _
    $region3: #{tpu_custom_call.1} parent=1 // loop_header
      %s35 = sphi 0, %s39
      %p36 = scmp.ge.s32.totalorder %s35, 4
      %s45 = sphi 0, %s47
      %s48 = sphi 0, %s45
      %s49 = sphi 0, %s48
      %s65 = sphi 0, %s49
      %s71 = sphi 0, %s73
      %s74 = sphi 0, %s71
      %s75 = sphi 0, %s74
      %s91 = sphi 0, %s75
      %s97 = sphi 0, %s99
      %s100 = sphi 0, %s97
      %s101 = sphi 0, %s100
      %s117 = sphi 0, %s101
      %s121 = sphi 0, %s121
      %s123 = sphi 0, %s121
      %s124 = sphi 0, %s123
      %s138 = sphi 0, %s124
      %s142 = sphi 0, %s142
      %s144 = sphi 0, %s142
      %s145 = sphi 0, %s144
      %s159 = sphi 0, %s145
      %s163 = sphi 0, %s163
      %s165 = sphi 0, %s163
      %s166 = sphi 0, %s165
      %s180 = sphi 0, %s166
      %s184 = sphi 0, %s184
      %s186 = sphi 0, %s184
      %s187 = sphi 0, %s186
      %s201 = sphi 0, %s187
      %s205 = sphi 0, %s205
      %s207 = sphi 0, %s205
      %s208 = sphi 0, %s207
      %s222 = sphi 0, %s208
      %s226 = sphi 0, %s226
      %s228 = sphi 0, %s226
      %s229 = sphi 0, %s228
      %s243 = sphi 0, %s229
      %s247 = sphi 0, %s247
      %s249 = sphi 0, %s247
      %s250 = sphi 0, %s249
      %s264 = sphi 0, %s250
      %s268 = sphi 0, %s268
      %s270 = sphi 0, %s268
      %s271 = sphi 0, %s270
      %s285 = sphi 0, %s271
      %s289 = sphi 0, %s289
      %s291 = sphi 0, %s289
      %s292 = sphi 0, %s291
      %s306 = sphi 0, %s292
      %s310 = sphi 0, %s310
      %s312 = sphi 0, %s310
      %s313 = sphi 0, %s312
      %s327 = sphi 0, %s313
      %s333 = sphi 0, %s335
      %s336 = sphi 0, %s333
      %s337 = sphi 0, %s336
      %s353 = sphi 0, %s337
    $region4: #{tpu_custom_call.1} parent=1 // loop_header_branch
      %38 = sbr.rel (%p36) target = $region8
    $region5: #{tpu_custom_call.1} parent=1 // loop_body
      %s40 = ssub.s32 %s35, 1
      %s41 = ssub.s32 %s35, 2
      %s42 = sadd.s32 %s35, 1
      %s43 = ssub.s32 %s35, %s42
      %p44 = scmp.eq.s32.totalorder %s43, 0
      %s46 = sadd.s32 %s45, 1
      %s47 = scalar_select %p44, %s45, %s46
      %p50 = pneg %p44
      %p51 = scmp.eq.s32.totalorder %s35, 1
      %p52 = por %p50, %p51
      %p53 = scmp.ne.s32.totalorder %s45, %s48
      %p54 = scmp.eq.s32.totalorder %s35, 0
      %p55 = por %p53, %p54
      %p56 = scmp.ne.s32.totalorder %s45, %s48
      %p57 = scmp.eq.s32.totalorder %s40, 1
      %p58 = por %p56, %p57
      %p59 = scmp.ne.s32.totalorder %s48, %s49
      %p60 = scmp.eq.s32.totalorder %s40, 0
      %p61 = por %p59, %p60
      %p62 = scmp.ne.s32.totalorder %s48, %s49
      %p63 = scmp.eq.s32.totalorder %s41, 1
      %p64 = por %p62, %p63
      %p66 = scmp.ne.s32.totalorder %s49, %s65
      %p67 = scmp.eq.s32.totalorder %s41, 0
      %p68 = por %p66, %p67
      %s69 = ssub.s32 %s35, %s42
      %p70 = scmp.eq.s32.totalorder %s69, 0
      %s72 = sadd.s32 %s71, 1
      %s73 = scalar_select %p70, %s71, %s72
      %p76 = pneg %p70
      %p77 = scmp.eq.s32.totalorder %s35, 1
      %p78 = por %p76, %p77
      %p79 = scmp.ne.s32.totalorder %s71, %s74
      %p80 = scmp.eq.s32.totalorder %s35, 0
      %p81 = por %p79, %p80
      %p82 = scmp.ne.s32.totalorder %s71, %s74
      %p83 = scmp.eq.s32.totalorder %s40, 1
      %p84 = por %p82, %p83
      %p85 = scmp.ne.s32.totalorder %s74, %s75
      %p86 = scmp.eq.s32.totalorder %s40, 0
      %p87 = por %p85, %p86
      %p88 = scmp.ne.s32.totalorder %s74, %s75
      %p89 = scmp.eq.s32.totalorder %s41, 1
      %p90 = por %p88, %p89
      %p92 = scmp.ne.s32.totalorder %s75, %s91
      %p93 = scmp.eq.s32.totalorder %s41, 0
      %p94 = por %p92, %p93
      %s95 = ssub.s32 %s35, %s42
      %p96 = scmp.eq.s32.totalorder %s95, 0
      %s98 = sadd.s32 %s97, 1
      %s99 = scalar_select %p96, %s97, %s98
      %p102 = pneg %p96
      %p103 = scmp.eq.s32.totalorder %s35, 1
      %p104 = por %p102, %p103
      %p105 = scmp.ne.s32.totalorder %s97, %s100
      %p106 = scmp.eq.s32.totalorder %s35, 0
      %p107 = por %p105, %p106
      %p108 = scmp.ne.s32.totalorder %s97, %s100
      %p109 = scmp.eq.s32.totalorder %s40, 1
      %p110 = por %p108, %p109
      %p111 = scmp.ne.s32.totalorder %s100, %s101
      %p112 = scmp.eq.s32.totalorder %s40, 0
      %p113 = por %p111, %p112
      %p114 = scmp.ne.s32.totalorder %s100, %s101
      %p115 = scmp.eq.s32.totalorder %s41, 1
      %p116 = por %p114, %p115
      %p118 = scmp.ne.s32.totalorder %s101, %s117
      %p119 = scmp.eq.s32.totalorder %s41, 0
      %p120 = por %p118, %p119
      %s122 = sadd.s32 %s121, 1
      %p125 = scmp.eq.s32.totalorder %s35, 1
      %p126 = scmp.ne.s32.totalorder %s121, %s123
      %p127 = scmp.eq.s32.totalorder %s35, 0
      %p128 = por %p126, %p127
      %p129 = scmp.ne.s32.totalorder %s121, %s123
      %p130 = scmp.eq.s32.totalorder %s40, 1
      %p131 = por %p129, %p130
      %p132 = scmp.ne.s32.totalorder %s123, %s124
      %p133 = scmp.eq.s32.totalorder %s40, 0
      %p134 = por %p132, %p133
      %p135 = scmp.ne.s32.totalorder %s123, %s124
      %p136 = scmp.eq.s32.totalorder %s41, 1
      %p137 = por %p135, %p136
      %p139 = scmp.ne.s32.totalorder %s124, %s138
      %p140 = scmp.eq.s32.totalorder %s41, 0
      %p141 = por %p139, %p140
      %s143 = sadd.s32 %s142, 1
      %p146 = scmp.eq.s32.totalorder %s35, 1
      %p147 = scmp.ne.s32.totalorder %s142, %s144
      %p148 = scmp.eq.s32.totalorder %s35, 0
      %p149 = por %p147, %p148
      %p150 = scmp.ne.s32.totalorder %s142, %s144
      %p151 = scmp.eq.s32.totalorder %s40, 1
      %p152 = por %p150, %p151
      %p153 = scmp.ne.s32.totalorder %s144, %s145
      %p154 = scmp.eq.s32.totalorder %s40, 0
      %p155 = por %p153, %p154
      %p156 = scmp.ne.s32.totalorder %s144, %s145
      %p157 = scmp.eq.s32.totalorder %s41, 1
      %p158 = por %p156, %p157
      %p160 = scmp.ne.s32.totalorder %s145, %s159
      %p161 = scmp.eq.s32.totalorder %s41, 0
      %p162 = por %p160, %p161
      %s164 = sadd.s32 %s163, 1
      %p167 = scmp.eq.s32.totalorder %s35, 1
      %p168 = scmp.ne.s32.totalorder %s163, %s165
      %p169 = scmp.eq.s32.totalorder %s35, 0
      %p170 = por %p168, %p169
      %p171 = scmp.ne.s32.totalorder %s163, %s165
      %p172 = scmp.eq.s32.totalorder %s40, 1
      %p173 = por %p171, %p172
      %p174 = scmp.ne.s32.totalorder %s165, %s166
      %p175 = scmp.eq.s32.totalorder %s40, 0
      %p176 = por %p174, %p175
      %p177 = scmp.ne.s32.totalorder %s165, %s166
      %p178 = scmp.eq.s32.totalorder %s41, 1
      %p179 = por %p177, %p178
      %p181 = scmp.ne.s32.totalorder %s166, %s180
      %p182 = scmp.eq.s32.totalorder %s41, 0
      %p183 = por %p181, %p182
      %s185 = sadd.s32 %s184, 1
      %p188 = scmp.eq.s32.totalorder %s35, 1
      %p189 = scmp.ne.s32.totalorder %s184, %s186
      %p190 = scmp.eq.s32.totalorder %s35, 0
      %p191 = por %p189, %p190
      %p192 = scmp.ne.s32.totalorder %s184, %s186
      %p193 = scmp.eq.s32.totalorder %s40, 1
      %p194 = por %p192, %p193
      %p195 = scmp.ne.s32.totalorder %s186, %s187
      %p196 = scmp.eq.s32.totalorder %s40, 0
      %p197 = por %p195, %p196
      %p198 = scmp.ne.s32.totalorder %s186, %s187
      %p199 = scmp.eq.s32.totalorder %s41, 1
      %p200 = por %p198, %p199
      %p202 = scmp.ne.s32.totalorder %s187, %s201
      %p203 = scmp.eq.s32.totalorder %s41, 0
      %p204 = por %p202, %p203
      %s206 = sadd.s32 %s205, 1
      %p209 = scmp.eq.s32.totalorder %s35, 1
      %p210 = scmp.ne.s32.totalorder %s205, %s207
      %p211 = scmp.eq.s32.totalorder %s35, 0
      %p212 = por %p210, %p211
      %p213 = scmp.ne.s32.totalorder %s205, %s207
      %p214 = scmp.eq.s32.totalorder %s40, 1
      %p215 = por %p213, %p214
      %p216 = scmp.ne.s32.totalorder %s207, %s208
      %p217 = scmp.eq.s32.totalorder %s40, 0
      %p218 = por %p216, %p217
      %p219 = scmp.ne.s32.totalorder %s207, %s208
      %p220 = scmp.eq.s32.totalorder %s41, 1
      %p221 = por %p219, %p220
      %p223 = scmp.ne.s32.totalorder %s208, %s222
      %p224 = scmp.eq.s32.totalorder %s41, 0
      %p225 = por %p223, %p224
      %s227 = sadd.s32 %s226, 1
      %p230 = scmp.eq.s32.totalorder %s35, 1
      %p231 = scmp.ne.s32.totalorder %s226, %s228
      %p232 = scmp.eq.s32.totalorder %s35, 0
      %p233 = por %p231, %p232
      %p234 = scmp.ne.s32.totalorder %s226, %s228
      %p235 = scmp.eq.s32.totalorder %s40, 1
      %p236 = por %p234, %p235
      %p237 = scmp.ne.s32.totalorder %s228, %s229
      %p238 = scmp.eq.s32.totalorder %s40, 0
      %p239 = por %p237, %p238
      %p240 = scmp.ne.s32.totalorder %s228, %s229
      %p241 = scmp.eq.s32.totalorder %s41, 1
      %p242 = por %p240, %p241
      %p244 = scmp.ne.s32.totalorder %s229, %s243
      %p245 = scmp.eq.s32.totalorder %s41, 0
      %p246 = por %p244, %p245
      %s248 = sadd.s32 %s247, 1
      %p251 = scmp.eq.s32.totalorder %s35, 1
      %p252 = scmp.ne.s32.totalorder %s247, %s249
      %p253 = scmp.eq.s32.totalorder %s35, 0
      %p254 = por %p252, %p253
      %p255 = scmp.ne.s32.totalorder %s247, %s249
      %p256 = scmp.eq.s32.totalorder %s40, 1
      %p257 = por %p255, %p256
      %p258 = scmp.ne.s32.totalorder %s249, %s250
      %p259 = scmp.eq.s32.totalorder %s40, 0
      %p260 = por %p258, %p259
      %p261 = scmp.ne.s32.totalorder %s249, %s250
      %p262 = scmp.eq.s32.totalorder %s41, 1
      %p263 = por %p261, %p262
      %p265 = scmp.ne.s32.totalorder %s250, %s264
      %p266 = scmp.eq.s32.totalorder %s41, 0
      %p267 = por %p265, %p266
      %s269 = sadd.s32 %s268, 1
      %p272 = scmp.eq.s32.totalorder %s35, 1
      %p273 = scmp.ne.s32.totalorder %s268, %s270
      %p274 = scmp.eq.s32.totalorder %s35, 0
      %p275 = por %p273, %p274
      %p276 = scmp.ne.s32.totalorder %s268, %s270
      %p277 = scmp.eq.s32.totalorder %s40, 1
      %p278 = por %p276, %p277
      %p279 = scmp.ne.s32.totalorder %s270, %s271
      %p280 = scmp.eq.s32.totalorder %s40, 0
      %p281 = por %p279, %p280
      %p282 = scmp.ne.s32.totalorder %s270, %s271
      %p283 = scmp.eq.s32.totalorder %s41, 1
      %p284 = por %p282, %p283
      %p286 = scmp.ne.s32.totalorder %s271, %s285
      %p287 = scmp.eq.s32.totalorder %s41, 0
      %p288 = por %p286, %p287
      %s290 = sadd.s32 %s289, 1
      %p293 = scmp.eq.s32.totalorder %s35, 1
      %p294 = scmp.ne.s32.totalorder %s289, %s291
      %p295 = scmp.eq.s32.totalorder %s35, 0
      %p296 = por %p294, %p295
      %p297 = scmp.ne.s32.totalorder %s289, %s291
      %p298 = scmp.eq.s32.totalorder %s40, 1
      %p299 = por %p297, %p298
      %p300 = scmp.ne.s32.totalorder %s291, %s292
      %p301 = scmp.eq.s32.totalorder %s40, 0
      %p302 = por %p300, %p301
      %p303 = scmp.ne.s32.totalorder %s291, %s292
      %p304 = scmp.eq.s32.totalorder %s41, 1
      %p305 = por %p303, %p304
      %p307 = scmp.ne.s32.totalorder %s292, %s306
      %p308 = scmp.eq.s32.totalorder %s41, 0
      %p309 = por %p307, %p308
      %s311 = sadd.s32 %s310, 1
      %p314 = scmp.eq.s32.totalorder %s35, 1
      %p315 = scmp.ne.s32.totalorder %s310, %s312
      %p316 = scmp.eq.s32.totalorder %s35, 0
      %p317 = por %p315, %p316
      %p318 = scmp.ne.s32.totalorder %s310, %s312
      %p319 = scmp.eq.s32.totalorder %s40, 1
      %p320 = por %p318, %p319
      %p321 = scmp.ne.s32.totalorder %s312, %s313
      %p322 = scmp.eq.s32.totalorder %s40, 0
      %p323 = por %p321, %p322
      %p324 = scmp.ne.s32.totalorder %s312, %s313
      %p325 = scmp.eq.s32.totalorder %s41, 1
      %p326 = por %p324, %p325
      %p328 = scmp.ne.s32.totalorder %s313, %s327
      %p329 = scmp.eq.s32.totalorder %s41, 0
      %p330 = por %p328, %p329
      %s331 = ssub.s32 %s35, %s42
      %p332 = scmp.eq.s32.totalorder %s331, 0
      %s334 = sadd.s32 %s333, 1
      %s335 = scalar_select %p332, %s333, %s334
      %p338 = pneg %p332
      %p339 = scmp.eq.s32.totalorder %s35, 1
      %p340 = por %p338, %p339
      %p341 = scmp.ne.s32.totalorder %s333, %s336
      %p342 = scmp.eq.s32.totalorder %s35, 0
      %p343 = por %p341, %p342
      %p344 = scmp.ne.s32.totalorder %s333, %s336
      %p345 = scmp.eq.s32.totalorder %s40, 1
      %p346 = por %p344, %p345
      %p347 = scmp.ne.s32.totalorder %s336, %s337
      %p348 = scmp.eq.s32.totalorder %s40, 0
      %p349 = por %p347, %p348
      %p350 = scmp.ne.s32.totalorder %s336, %s337
      %p351 = scmp.eq.s32.totalorder %s41, 1
      %p352 = por %p350, %p351
      %p354 = scmp.ne.s32.totalorder %s337, %s353
      %p355 = scmp.eq.s32.totalorder %s41, 0
      %p356 = por %p354, %p355
      %p357 = scmp.le.s32.totalorder 1, %s35
      %p358 = scmp.lt.s32.totalorder %s35, 3
      %p359 = pnand %p357, %p358
      %p360 = pneg %p359
      // Predicated region
      $region9: #{tpu_custom_call.1} parent=5 // pred_check
        _
      $region10: #{tpu_custom_call.1} parent=5 // pred_check_branch
        %362 = sbr.rel (%p359) target = $region12
      $region11: #{tpu_custom_call.1} parent=5 // pred_region
        %s363 = ssub.s32 %s35, 1
        // Predicated region
        $region13: #{tpu_custom_call.1} parent=11 // pred_check
          %p364 = pneg %p134
        $region14: #{tpu_custom_call.1} parent=11 // pred_check_branch
          %366 = sbr.rel (%p364) target = $region16
        $region15: #{tpu_custom_call.1} parent=11 // pred_region
          %s368 = ssub.s32 1024, 1024
          %369 = vsyncadd [#allocation12], %s368
          %s370 = sshll.u32 [#allocation13], 4
          %s371 = int_to_ptr.vmem [resolvable:$true] %s370
          %376 = dma.hbm_to_vmem [thread:$0]  %s4, 1024, %s371, [#allocation12], 128, 128, 8
        $region16: #{tpu_custom_call.1} parent=11 // pred_fallthru
          _
        // Predicated region
        $region17: #{tpu_custom_call.1} parent=11 // pred_check
          %p377 = pneg %p155
        $region18: #{tpu_custom_call.1} parent=11 // pred_check_branch
          %379 = sbr.rel (%p377) target = $region20
        $region19: #{tpu_custom_call.1} parent=11 // pred_region
          %s381 = ssub.s32 32, 32
          %382 = vsyncadd [#allocation15], %s381
          %s383 = sshll.u32 [#allocation14], 4
          %s384 = int_to_ptr.vmem [resolvable:$true] %s383
          %389 = dma.hbm_to_vmem [thread:$0]  %s5, 32, %s384, [#allocation15], 16, 16, 1
        $region20: #{tpu_custom_call.1} parent=11 // pred_fallthru
          _
        // Predicated region
        $region21: #{tpu_custom_call.1} parent=11 // pred_check
          %p390 = pneg %p176
        $region22: #{tpu_custom_call.1} parent=11 // pred_check_branch
          %392 = sbr.rel (%p390) target = $region24
        $region23: #{tpu_custom_call.1} parent=11 // pred_region
          _
        $region24: #{tpu_custom_call.1} parent=11 // pred_fallthru
          _
        // Predicated region
        $region25: #{tpu_custom_call.1} parent=11 // pred_check
          %p393 = pneg %p197
        $region26: #{tpu_custom_call.1} parent=11 // pred_check_branch
          %395 = sbr.rel (%p393) target = $region28
        $region27: #{tpu_custom_call.1} parent=11 // pred_region
          %s397 = ssub.s32 256, 256
          %398 = vsyncadd [#allocation15], %s397
          %s399 = sshll.u32 [#allocation16], 4
          %s400 = int_to_ptr.vmem [resolvable:$true] %s399
          %405 = dma.hbm_to_vmem [thread:$0]  %s7, 256, %s400, [#allocation15], 128, 128, 8
        $region28: #{tpu_custom_call.1} parent=11 // pred_fallthru
          _
        // Predicated region
        $region29: #{tpu_custom_call.1} parent=11 // pred_check
          %p406 = pneg %p218
        $region30: #{tpu_custom_call.1} parent=11 // pred_check_branch
          %408 = sbr.rel (%p406) target = $region32
        $region31: #{tpu_custom_call.1} parent=11 // pred_region
          %s410 = ssub.s32 16, 16
          %411 = vsyncadd [#allocation18], %s410
          %s413 = sshll.u32 [#allocation17], 4
          %s414 = int_to_ptr.vmem [resolvable:$true] %s413
          %416 = dma.hbm_to_vmem [thread:$0]  %s8, 16, %s414, [#allocation18]
        $region32: #{tpu_custom_call.1} parent=11 // pred_fallthru
          _
        // Predicated region
        $region33: #{tpu_custom_call.1} parent=11 // pred_check
          %p417 = pneg %p239
        $region34: #{tpu_custom_call.1} parent=11 // pred_check_branch
          %419 = sbr.rel (%p417) target = $region36
        $region35: #{tpu_custom_call.1} parent=11 // pred_region
          _
        $region36: #{tpu_custom_call.1} parent=11 // pred_fallthru
          _
        // Predicated region
        $region37: #{tpu_custom_call.1} parent=11 // pred_check
          %p420 = pneg %p260
        $region38: #{tpu_custom_call.1} parent=11 // pred_check_branch
          %422 = sbr.rel (%p420) target = $region40
        $region39: #{tpu_custom_call.1} parent=11 // pred_region
          %s424 = ssub.s32 512, 512
          %425 = vsyncadd [#allocation18], %s424
          %s426 = sshll.u32 [#allocation19], 4
          %s427 = int_to_ptr.vmem [resolvable:$true] %s426
          %432 = dma.hbm_to_vmem [thread:$0]  %s10, 512, %s427, [#allocation18], 128, 128, 8
        $region40: #{tpu_custom_call.1} parent=11 // pred_fallthru
          _
        // Predicated region
        $region41: #{tpu_custom_call.1} parent=11 // pred_check
          %p433 = pneg %p281
        $region42: #{tpu_custom_call.1} parent=11 // pred_check_branch
          %435 = sbr.rel (%p433) target = $region44
        $region43: #{tpu_custom_call.1} parent=11 // pred_region
          _
        $region44: #{tpu_custom_call.1} parent=11 // pred_fallthru
          _
        // Predicated region
        $region45: #{tpu_custom_call.1} parent=11 // pred_check
          %p436 = pneg %p302
        $region46: #{tpu_custom_call.1} parent=11 // pred_check_branch
          %438 = sbr.rel (%p436) target = $region48
        $region47: #{tpu_custom_call.1} parent=11 // pred_region
          _
        $region48: #{tpu_custom_call.1} parent=11 // pred_fallthru
          _
        // Predicated region
        $region49: #{tpu_custom_call.1} parent=11 // pred_check
          %p439 = pneg %p323
        $region50: #{tpu_custom_call.1} parent=11 // pred_check_branch
          %441 = sbr.rel (%p439) target = $region52
        $region51: #{tpu_custom_call.1} parent=11 // pred_region
          _
        $region52: #{tpu_custom_call.1} parent=11 // pred_fallthru
          _
      $region12: #{tpu_custom_call.1} parent=5 // pred_fallthru
        _
      %p442 = scmp.lt.s32.totalorder %s35, 2
      // Predicated region
      $region53: #{tpu_custom_call.1} parent=5 // pred_check
        %p443 = pneg %p442
      $region54: #{tpu_custom_call.1} parent=5 // pred_check_branch
        %445 = sbr.rel (%p443) target = $region56
      $region55: #{tpu_custom_call.1} parent=5 // pred_region
        // Predicated region
        $region57: #{tpu_custom_call.1} parent=55 // pred_check
          %p446 = pneg %p55
        $region58: #{tpu_custom_call.1} parent=55 // pred_check_branch
          %448 = sbr.rel (%p446) target = $region60
        $region59: #{tpu_custom_call.1} parent=55 // pred_region
          %s449 = sand.u32 %s45, 1
          %s450 = scalar_lea.sflag [#allocation9], %s449
          %s451 = sand.u32 %s45, 1
          %s452 = smul.addr %s451, 8
          %s453 = scalar_lea.vmem [#allocation8], %s452
          %s455 = ssub.s32 128, 128
          %456 = vsyncadd %s450, %s455
          %s457 = smul.addr %s35, 128
          %s458 = scalar_lea.hbm %s1, %s457
          %s460 = sshll.u32 %s453, 4
          %s461 = int_to_ptr.vmem [resolvable:$true] %s460
          %463 = dma.hbm_to_vmem [thread:$0]  %s458, 128, %s461, %s450
        $region60: #{tpu_custom_call.1} parent=55 // pred_fallthru
          _
        // Predicated region
        $region61: #{tpu_custom_call.1} parent=55 // pred_check
          %p464 = pneg %p81
        $region62: #{tpu_custom_call.1} parent=55 // pred_check_branch
          %466 = sbr.rel (%p464) target = $region64
        $region63: #{tpu_custom_call.1} parent=55 // pred_region
          %s467 = sand.u32 %s35, 1
          %s468 = scalar_lea.sflag [#allocation12], %s467
          %s469 = sand.u32 %s71, 1
          %s470 = smul.addr %s469, 8
          %s471 = scalar_lea.vmem [#allocation11], %s470
          %s473 = ssub.s32 128, 128
          %474 = vsyncadd %s468, %s473
          %s475 = smul.addr %s35, 128
          %s476 = scalar_lea.hbm %s2, %s475
          %s478 = sshll.u32 %s471, 4
          %s479 = int_to_ptr.vmem [resolvable:$true] %s478
          %481 = dma.hbm_to_vmem [thread:$0]  %s476, 128, %s479, %s468
        $region64: #{tpu_custom_call.1} parent=55 // pred_fallthru
          _
        // Predicated region
        $region65: #{tpu_custom_call.1} parent=55 // pred_check
          %p482 = pneg %p107
        $region66: #{tpu_custom_call.1} parent=55 // pred_check_branch
          %484 = sbr.rel (%p482) target = $region68
        $region67: #{tpu_custom_call.1} parent=55 // pred_region
          %p485 = scmp.lt.s32.totalorder %s35, 1
          %s486 = scalar_select %p485, %s35, 1
          %s487 = smul.addr %s486, 8
          %s488 = scalar_lea.vmem %s3, %s487
        $region68: #{tpu_custom_call.1} parent=55 // pred_fallthru
          _
      $region56: #{tpu_custom_call.1} parent=5 // pred_fallthru
        _
      %p489 = scmp.le.s32.totalorder 1, %s35
      %p490 = scmp.lt.s32.totalorder %s35, 3
      %p491 = pnand %p489, %p490
      %p492 = pneg %p491
      // Predicated region
      $region69: #{tpu_custom_call.1} parent=5 // pred_check
        _
      $region70: #{tpu_custom_call.1} parent=5 // pred_check_branch
        %494 = sbr.rel (%p491) target = $region72
      $region71: #{tpu_custom_call.1} parent=5 // pred_region
        %s495 = ssub.s32 %s35, 1
        %s496 = sand.u32 %s48, 1
        %s497 = scalar_lea.sflag [#allocation9], %s496
        %s498 = sand.u32 %s48, 1
        %s499 = smul.addr %s498, 8
        %s500 = scalar_lea.vmem [#allocation8], %s499
        // Predicated region
        $region73: #{tpu_custom_call.1} parent=71 // pred_check
          %p501 = pneg %p61
        $region74: #{tpu_custom_call.1} parent=71 // pred_check_branch
          %503 = sbr.rel (%p501) target = $region76
        $region75: #{tpu_custom_call.1} parent=71 // pred_region
          %504 = dma.done %s497, 128
        $region76: #{tpu_custom_call.1} parent=71 // pred_fallthru
          _
        %s505 = sand.u32 %s40, 1
        %s506 = scalar_lea.sflag [#allocation12], %s505
        %s507 = sand.u32 %s74, 1
        %s508 = smul.addr %s507, 8
        %s509 = scalar_lea.vmem [#allocation11], %s508
        // Predicated region
        $region77: #{tpu_custom_call.1} parent=71 // pred_check
          %p510 = pneg %p87
        $region78: #{tpu_custom_call.1} parent=71 // pred_check_branch
          %512 = sbr.rel (%p510) target = $region80
        $region79: #{tpu_custom_call.1} parent=71 // pred_region
          %513 = dma.done %s506, 128
        $region80: #{tpu_custom_call.1} parent=71 // pred_fallthru
          _
        // Predicated region
        $region81: #{tpu_custom_call.1} parent=71 // pred_check
          %p514 = pneg %p134
        $region82: #{tpu_custom_call.1} parent=71 // pred_check_branch
          %516 = sbr.rel (%p514) target = $region84
        $region83: #{tpu_custom_call.1} parent=71 // pred_region
          %517 = dma.done [#allocation12], 1024
        $region84: #{tpu_custom_call.1} parent=71 // pred_fallthru
          _
        // Predicated region
        $region85: #{tpu_custom_call.1} parent=71 // pred_check
          %p518 = pneg %p155
        $region86: #{tpu_custom_call.1} parent=71 // pred_check_branch
          %520 = sbr.rel (%p518) target = $region88
        $region87: #{tpu_custom_call.1} parent=71 // pred_region
          %521 = dma.done [#allocation15], 32
        $region88: #{tpu_custom_call.1} parent=71 // pred_fallthru
          _
        // Predicated region
        $region89: #{tpu_custom_call.1} parent=71 // pred_check
          %p522 = pneg %p197
        $region90: #{tpu_custom_call.1} parent=71 // pred_check_branch
          %524 = sbr.rel (%p522) target = $region92
        $region91: #{tpu_custom_call.1} parent=71 // pred_region
          %525 = dma.done [#allocation15], 256
        $region92: #{tpu_custom_call.1} parent=71 // pred_fallthru
          _
        // Predicated region
        $region93: #{tpu_custom_call.1} parent=71 // pred_check
          %p526 = pneg %p218
        $region94: #{tpu_custom_call.1} parent=71 // pred_check_branch
          %528 = sbr.rel (%p526) target = $region96
        $region95: #{tpu_custom_call.1} parent=71 // pred_region
          %529 = dma.done [#allocation18], 16
        $region96: #{tpu_custom_call.1} parent=71 // pred_fallthru
          _
        // Predicated region
        $region97: #{tpu_custom_call.1} parent=71 // pred_check
          %p530 = pneg %p260
        $region98: #{tpu_custom_call.1} parent=71 // pred_check_branch
          %532 = sbr.rel (%p530) target = $region100
        $region99: #{tpu_custom_call.1} parent=71 // pred_region
          %533 = dma.done [#allocation18], 512
        $region100: #{tpu_custom_call.1} parent=71 // pred_fallthru
          _
        %s534 = sand.u32 %s48, 1
        %s535 = scalar_lea.sflag [#allocation9], %s534
        %s536 = sand.u32 %s48, 1
        %s537 = smul.addr %s536, 8
        %s538 = scalar_lea.vmem [#allocation8], %s537
        %p539 = pneg %p61
        %p540 = pneg %p58
        %s541 = sand.u32 %s40, 1
        %s542 = scalar_lea.sflag [#allocation12], %s541
        %s543 = sand.u32 %s74, 1
        %s544 = smul.addr %s543, 8
        %s545 = scalar_lea.vmem [#allocation11], %s544
        %p546 = pneg %p87
        %p547 = pneg %p84
        %p548 = scmp.lt.s32.totalorder %s40, 1
        %s549 = scalar_select %p548, %s40, 1
        %s550 = smul.addr %s549, 8
        %s551 = scalar_lea.vmem %s3, %s550
        %p552 = pneg %p113
        %p553 = pneg %p110
        %p554 = pneg %p134
        %p555 = pneg %p131
        %p556 = pneg %p155
        %p557 = pneg %p152
        %p558 = pneg %p176
        %p559 = pneg %p173
        %p560 = pneg %p197
        %p561 = pneg %p194
        %p562 = pneg %p218
        %p563 = pneg %p215
        %p564 = pneg %p239
        %p565 = pneg %p236
        %p566 = pneg %p260
        %p567 = pneg %p257
        %p568 = pneg %p281
        %p569 = pneg %p278
        %p570 = pneg %p302
        %p571 = pneg %p299
        %p572 = pneg %p323
        %p573 = pneg %p320
        %p574 = pneg %p349
        %p575 = pneg %p346
        %s576 = sand.u32 %s336, 1
        %s577 = scalar_lea.sflag [#allocation10], %s576
        %s578 = sand.u32 %s336, 1
        %s579 = smul.addr %s578, 8
        %s580 = scalar_lea.vmem [#allocation20], %s579
        %p581 = scmp.lt.s32.totalorder %s40, 1
        %s582 = scalar_select %p581, %s40, 1
        %s583 = smul.addr %s582, 8
        %s584 = scalar_lea.vmem %s3, %s583
        %s585 = sld [smem:[#allocation7 + %s40]]
        %v586 = vld [vmem:[%s500] sm:$0xff]
        %v587 = vld [vmem:[%s509] sm:$0xff]
        %v588 = vld [vmem:[%s584] sm:$0xff]
        %vm589 = vcmask 64512
        %v591 = vsel %vm589, %v587, 0
        %593 = vmatprep.subr.mxu0 0.0
        %594 = vmatpush1.msra.mxu0 %v586
        %595 = vmatprep.subr.mxu0 0.0
        %596 = vmatpush1.msra.mxu0 0.0
        %597 = vmatprep.subr.mxu0 0.0
        %598 = vmatpush1.msra.mxu0 0.0
        %599 = vmatprep.subr.mxu0 0.0
        %600 = vmatpush1.msra.mxu0 0.0
        %601 = vmatprep.subr.mxu0 0.0
        %602 = vmatpush1.msra.mxu0 0.0
        %603 = vmatprep.subr.mxu0 0.0
        %604 = vmatpush1.msra.mxu0 0.0
        %605 = vmatprep.subr.mxu0 0.0
        %606 = vmatpush1.msra.mxu0 0.0
        %607 = vmatprep.subr.mxu0 0.0
        %608 = vmatpush1.msra.mxu0 0.0
        %609 = vmatprep.subr.mxu0 0.0
        %610 = vmatpush1.msra.mxu0 0.0
        %611 = vmatprep.subr.mxu0 0.0
        %612 = vmatpush1.msra.mxu0 0.0
        %613 = vmatprep.subr.mxu0 0.0
        %614 = vmatpush1.msra.mxu0 0.0
        %615 = vmatprep.subr.mxu0 0.0
        %616 = vmatpush1.msra.mxu0 0.0
        %617 = vmatprep.subr.mxu0 0.0
        %618 = vmatpush1.msra.mxu0 0.0
        %619 = vmatprep.subr.mxu0 0.0
        %620 = vmatpush1.msra.mxu0 0.0
        %621 = vmatprep.subr.mxu0 0.0
        %622 = vmatpush1.msra.mxu0 0.0
        %623 = vmatprep.subr.mxu0 0.0
        %624 = vmatpush1.msra.mxu0 0.0
        %625 = vmatprep.subr.mxu0 0.0
        %626 = vmatpush1.msra.mxu0 0.0
        %627 = vmatprep.subr.mxu0 0.0
        %628 = vmatpush1.msra.mxu0 0.0
        %629 = vmatprep.subr.mxu0 0.0
        %630 = vmatpush1.msra.mxu0 0.0
        %631 = vmatprep.subr.mxu0 0.0
        %632 = vmatpush1.msra.mxu0 0.0
        %633 = vmatprep.subr.mxu0 0.0
        %634 = vmatpush1.msra.mxu0 0.0
        %635 = vmatprep.subr.mxu0 0.0
        %636 = vmatpush1.msra.mxu0 0.0
        %637 = vmatprep.subr.mxu0 0.0
        %638 = vmatpush1.msra.mxu0 0.0
        %639 = vmatprep.subr.mxu0 0.0
        %640 = vmatpush1.msra.mxu0 0.0
        %641 = vmatprep.subr.mxu0 0.0
        %642 = vmatpush1.msra.mxu0 0.0
        %643 = vmatprep.subr.mxu0 0.0
        %644 = vmatpush1.msra.mxu0 0.0
        %645 = vmatprep.subr.mxu0 0.0
        %646 = vmatpush1.msra.mxu0 0.0
        %647 = vmatprep.subr.mxu0 0.0
        %648 = vmatpush1.msra.mxu0 0.0
        %649 = vmatprep.subr.mxu0 0.0
        %650 = vmatpush1.msra.mxu0 0.0
        %651 = vmatprep.subr.mxu0 0.0
        %652 = vmatpush1.msra.mxu0 0.0
        %653 = vmatprep.subr.mxu0 0.0
        %654 = vmatpush1.msra.mxu0 0.0
        %655 = vmatprep.subr.mxu0 0.0
        %656 = vmatpush1.msra.mxu0 0.0
        %657 = vmatprep.mubr.f32.mxu0 0.0
        %658 = vmatmul.mubr.f32.gmra.mrb[0].mxu0 %v591
        %v659 = vpop.f32.mrb[0].mxu0
        %v660 = vadd.f32 0.0, %v659
        %v661 = vpop.f32.mrb[0].mxu0
        %662 = vdwg.mxu0
        %v663 = vld [vmem:[#allocation13] sm:$0xff]
        %v664 = vld [vmem:[#allocation13 + $0x8] sm:$0xff]
        %v665 = vld [vmem:[#allocation13 + $0x10] sm:$0xff]
        %v666 = vld [vmem:[#allocation13 + $0x18] sm:$0xff]
        %v667 = vld [vmem:[#allocation14] sm:$0x1]
        %v669 = vlaneseq
        %v670 = vshrl.u32 %v669, 7
        %v671 = vsub.s32 0, %v670
        %v672 = vrot.slane %v667, %v671
        %vm674 = vcmask 261120
        %v676 = vsel %vm674, %v660, 0
        %678 = vmatprep.subr.mxu0 0.0
        %679 = vmatpush1.msra.mxu0 %v663
        %680 = vmatprep.subr.mxu0 0.0
        %681 = vmatpush1.msra.mxu0 %v664
        %682 = vmatprep.subr.mxu0 0.0
        %683 = vmatpush1.msra.mxu0 %v665
        %684 = vmatprep.subr.mxu0 0.0
        %685 = vmatpush1.msra.mxu0 %v666
        %686 = vmatprep.subr.mxu0 0.0
        %687 = vmatpush1.msra.mxu0 0.0
        %688 = vmatprep.subr.mxu0 0.0
        %689 = vmatpush1.msra.mxu0 0.0
        %690 = vmatprep.subr.mxu0 0.0
        %691 = vmatpush1.msra.mxu0 0.0
        %692 = vmatprep.subr.mxu0 0.0
        %693 = vmatpush1.msra.mxu0 0.0
        %694 = vmatprep.subr.mxu0 0.0
        %695 = vmatpush1.msra.mxu0 0.0
        %696 = vmatprep.subr.mxu0 0.0
        %697 = vmatpush1.msra.mxu0 0.0
        %698 = vmatprep.subr.mxu0 0.0
        %699 = vmatpush1.msra.mxu0 0.0
        %700 = vmatprep.subr.mxu0 0.0
        %701 = vmatpush1.msra.mxu0 0.0
        %702 = vmatprep.subr.mxu0 0.0
        %703 = vmatpush1.msra.mxu0 0.0
        %704 = vmatprep.subr.mxu0 0.0
        %705 = vmatpush1.msra.mxu0 0.0
        %706 = vmatprep.subr.mxu0 0.0
        %707 = vmatpush1.msra.mxu0 0.0
        %708 = vmatprep.subr.mxu0 0.0
        %709 = vmatpush1.msra.mxu0 0.0
        %710 = vmatprep.subr.mxu0 0.0
        %711 = vmatpush1.msra.mxu0 0.0
        %712 = vmatprep.subr.mxu0 0.0
        %713 = vmatpush1.msra.mxu0 0.0
        %714 = vmatprep.subr.mxu0 0.0
        %715 = vmatpush1.msra.mxu0 0.0
        %716 = vmatprep.subr.mxu0 0.0
        %717 = vmatpush1.msra.mxu0 0.0
        %718 = vmatprep.subr.mxu0 0.0
        %719 = vmatpush1.msra.mxu0 0.0
        %720 = vmatprep.subr.mxu0 0.0
        %721 = vmatpush1.msra.mxu0 0.0
        %722 = vmatprep.subr.mxu0 0.0
        %723 = vmatpush1.msra.mxu0 0.0
        %724 = vmatprep.subr.mxu0 0.0
        %725 = vmatpush1.msra.mxu0 0.0
        %726 = vmatprep.subr.mxu0 0.0
        %727 = vmatpush1.msra.mxu0 0.0
        %728 = vmatprep.subr.mxu0 0.0
        %729 = vmatpush1.msra.mxu0 0.0
        %730 = vmatprep.subr.mxu0 0.0
        %731 = vmatpush1.msra.mxu0 0.0
        %732 = vmatprep.subr.mxu0 0.0
        %733 = vmatpush1.msra.mxu0 0.0
        %734 = vmatprep.subr.mxu0 0.0
        %735 = vmatpush1.msra.mxu0 0.0
        %736 = vmatprep.subr.mxu0 0.0
        %737 = vmatpush1.msra.mxu0 0.0
        %738 = vmatprep.subr.mxu0 0.0
        %739 = vmatpush1.msra.mxu0 0.0
        %740 = vmatprep.subr.mxu0 0.0
        %741 = vmatpush1.msra.mxu0 0.0
        %742 = vmatprep.mubr.f32.mxu0 0.0
        %743 = vmatmul.mubr.f32.gmra.mrb[0].mxu0 %v676
        %v744 = vpop.f32.mrb[0].mxu0
        %v745 = vadd.f32 %v672, %v744
        %v746 = vpop.f32.mrb[0].mxu0
        %747 = vdwg.mxu0
        %v748 = vmax.f32 %v745, 0.0
        %750 = vset.pattern.permute.xlu0 0
        %751 = vperm.xlu0 %750, %v588
        %v752 = vpop.permute.xlu0 %751
        %v754 = vmul.f32 %v748, %v752
        %v755 = vadd.f32 %v586, %v754
        %756 = vmatprep.subr.mxu0 0.0
        %757 = vmatpush1.msra.mxu0 %v755
        %758 = vmatprep.subr.mxu0 0.0
        %759 = vmatpush1.msra.mxu0 0.0
        %760 = vmatprep.subr.mxu0 0.0
        %761 = vmatpush1.msra.mxu0 0.0
        %762 = vmatprep.subr.mxu0 0.0
        %763 = vmatpush1.msra.mxu0 0.0
        %764 = vmatprep.subr.mxu0 0.0
        %765 = vmatpush1.msra.mxu0 0.0
        %766 = vmatprep.subr.mxu0 0.0
        %767 = vmatpush1.msra.mxu0 0.0
        %768 = vmatprep.subr.mxu0 0.0
        %769 = vmatpush1.msra.mxu0 0.0
        %770 = vmatprep.subr.mxu0 0.0
        %771 = vmatpush1.msra.mxu0 0.0
        %772 = vmatprep.subr.mxu0 0.0
        %773 = vmatpush1.msra.mxu0 0.0
        %774 = vmatprep.subr.mxu0 0.0
        %775 = vmatpush1.msra.mxu0 0.0
        %776 = vmatprep.subr.mxu0 0.0
        %777 = vmatpush1.msra.mxu0 0.0
        %778 = vmatprep.subr.mxu0 0.0
        %779 = vmatpush1.msra.mxu0 0.0
        %780 = vmatprep.subr.mxu0 0.0
        %781 = vmatpush1.msra.mxu0 0.0
        %782 = vmatprep.subr.mxu0 0.0
        %783 = vmatpush1.msra.mxu0 0.0
        %784 = vmatprep.subr.mxu0 0.0
        %785 = vmatpush1.msra.mxu0 0.0
        %786 = vmatprep.subr.mxu0 0.0
        %787 = vmatpush1.msra.mxu0 0.0
        %788 = vmatprep.subr.mxu0 0.0
        %789 = vmatpush1.msra.mxu0 0.0
        %790 = vmatprep.subr.mxu0 0.0
        %791 = vmatpush1.msra.mxu0 0.0
        %792 = vmatprep.subr.mxu0 0.0
        %793 = vmatpush1.msra.mxu0 0.0
        %794 = vmatprep.subr.mxu0 0.0
        %795 = vmatpush1.msra.mxu0 0.0
        %796 = vmatprep.subr.mxu0 0.0
        %797 = vmatpush1.msra.mxu0 0.0
        %798 = vmatprep.subr.mxu0 0.0
        %799 = vmatpush1.msra.mxu0 0.0
        %800 = vmatprep.subr.mxu0 0.0
        %801 = vmatpush1.msra.mxu0 0.0
        %802 = vmatprep.subr.mxu0 0.0
        %803 = vmatpush1.msra.mxu0 0.0
        %804 = vmatprep.subr.mxu0 0.0
        %805 = vmatpush1.msra.mxu0 0.0
        %806 = vmatprep.subr.mxu0 0.0
        %807 = vmatpush1.msra.mxu0 0.0
        %808 = vmatprep.subr.mxu0 0.0
        %809 = vmatpush1.msra.mxu0 0.0
        %810 = vmatprep.subr.mxu0 0.0
        %811 = vmatpush1.msra.mxu0 0.0
        %812 = vmatprep.subr.mxu0 0.0
        %813 = vmatpush1.msra.mxu0 0.0
        %814 = vmatprep.subr.mxu0 0.0
        %815 = vmatpush1.msra.mxu0 0.0
        %816 = vmatprep.subr.mxu0 0.0
        %817 = vmatpush1.msra.mxu0 0.0
        %818 = vmatprep.subr.mxu0 0.0
        %819 = vmatpush1.msra.mxu0 0.0
        %820 = vmatprep.mubr.f32.mxu0 0.0
        %821 = vmatmul.mubr.f32.gmra.mrb[0].mxu0 %v591
        %v822 = vpop.f32.mrb[0].mxu0
        %v823 = vadd.f32 0.0, %v822
        %v824 = vpop.f32.mrb[0].mxu0
        %825 = vdwg.mxu0
        %s826 = scalar_lea.vmem [#allocation13], 32
        %v827 = vld [vmem:[%s826] sm:$0xff]
        %v828 = vld [vmem:[%s826 + $0x8] sm:$0xff]
        %v829 = vld [vmem:[%s826 + $0x10] sm:$0xff]
        %v830 = vld [vmem:[%s826 + $0x18] sm:$0xff]
        %s831 = scalar_lea.vmem [#allocation14], 1
        %v832 = vld [vmem:[%s831] sm:$0x1]
        %v834 = vlaneseq
        %v835 = vshrl.u32 %v834, 7
        %v836 = vsub.s32 0, %v835
        %v837 = vrot.slane %v832, %v836
        %v840 = vsel %vm674, %v823, 0
        %842 = vmatprep.subr.mxu0 0.0
        %843 = vmatpush1.msra.mxu0 %v827
        %844 = vmatprep.subr.mxu0 0.0
        %845 = vmatpush1.msra.mxu0 %v828
        %846 = vmatprep.subr.mxu0 0.0
        %847 = vmatpush1.msra.mxu0 %v829
        %848 = vmatprep.subr.mxu0 0.0
        %849 = vmatpush1.msra.mxu0 %v830
        %850 = vmatprep.subr.mxu0 0.0
        %851 = vmatpush1.msra.mxu0 0.0
        %852 = vmatprep.subr.mxu0 0.0
        %853 = vmatpush1.msra.mxu0 0.0
        %854 = vmatprep.subr.mxu0 0.0
        %855 = vmatpush1.msra.mxu0 0.0
        %856 = vmatprep.subr.mxu0 0.0
        %857 = vmatpush1.msra.mxu0 0.0
        %858 = vmatprep.subr.mxu0 0.0
        %859 = vmatpush1.msra.mxu0 0.0
        %860 = vmatprep.subr.mxu0 0.0
        %861 = vmatpush1.msra.mxu0 0.0
        %862 = vmatprep.subr.mxu0 0.0
        %863 = vmatpush1.msra.mxu0 0.0
        %864 = vmatprep.subr.mxu0 0.0
        %865 = vmatpush1.msra.mxu0 0.0
        %866 = vmatprep.subr.mxu0 0.0
        %867 = vmatpush1.msra.mxu0 0.0
        %868 = vmatprep.subr.mxu0 0.0
        %869 = vmatpush1.msra.mxu0 0.0
        %870 = vmatprep.subr.mxu0 0.0
        %871 = vmatpush1.msra.mxu0 0.0
        %872 = vmatprep.subr.mxu0 0.0
        %873 = vmatpush1.msra.mxu0 0.0
        %874 = vmatprep.subr.mxu0 0.0
        %875 = vmatpush1.msra.mxu0 0.0
        %876 = vmatprep.subr.mxu0 0.0
        %877 = vmatpush1.msra.mxu0 0.0
        %878 = vmatprep.subr.mxu0 0.0
        %879 = vmatpush1.msra.mxu0 0.0
        %880 = vmatprep.subr.mxu0 0.0
        %881 = vmatpush1.msra.mxu0 0.0
        %882 = vmatprep.subr.mxu0 0.0
        %883 = vmatpush1.msra.mxu0 0.0
        %884 = vmatprep.subr.mxu0 0.0
        %885 = vmatpush1.msra.mxu0 0.0
        %886 = vmatprep.subr.mxu0 0.0
        %887 = vmatpush1.msra.mxu0 0.0
        %888 = vmatprep.subr.mxu0 0.0
        %889 = vmatpush1.msra.mxu0 0.0
        %890 = vmatprep.subr.mxu0 0.0
        %891 = vmatpush1.msra.mxu0 0.0
        %892 = vmatprep.subr.mxu0 0.0
        %893 = vmatpush1.msra.mxu0 0.0
        %894 = vmatprep.subr.mxu0 0.0
        %895 = vmatpush1.msra.mxu0 0.0
        %896 = vmatprep.subr.mxu0 0.0
        %897 = vmatpush1.msra.mxu0 0.0
        %898 = vmatprep.subr.mxu0 0.0
        %899 = vmatpush1.msra.mxu0 0.0
        %900 = vmatprep.subr.mxu0 0.0
        %901 = vmatpush1.msra.mxu0 0.0
        %902 = vmatprep.subr.mxu0 0.0
        %903 = vmatpush1.msra.mxu0 0.0
        %904 = vmatprep.subr.mxu0 0.0
        %905 = vmatpush1.msra.mxu0 0.0
        %906 = vmatprep.mubr.f32.mxu0 0.0
        %907 = vmatmul.mubr.f32.gmra.mrb[0].mxu0 %v840
        %v908 = vpop.f32.mrb[0].mxu0
        %v909 = vadd.f32 %v837, %v908
        %v910 = vpop.f32.mrb[0].mxu0
        %911 = vdwg.mxu0
        %v912 = vmax.f32 %v909, 0.0
        %v913 = vmul.f32 %v912, %v752
        %v914 = vadd.f32 %v755, %v913
        %v915 = vld [vmem:[%s6] sm:$0xff]
        %v916 = vld [vmem:[%s6 + $0x8] sm:$0xff]
        %v917 = vld [vmem:[%s6 + $0x10] sm:$0xff]
        %v918 = vld [vmem:[%s6 + $0x18] sm:$0xff]
        %v919 = vld [vmem:[#allocation17] sm:$0x1]
        %v921 = vlaneseq
        %v922 = vshrl.u32 %v921, 7
        %v923 = vsub.s32 0, %v922
        %v924 = vrot.slane %v919, %v923
        %v927 = vsel %vm674, %v914, 0
        %929 = vmatprep.subr.mxu0 0.0
        %930 = vmatpush1.msra.mxu0 %v915
        %931 = vmatprep.subr.mxu0 0.0
        %932 = vmatpush1.msra.mxu0 %v916
        %933 = vmatprep.subr.mxu0 0.0
        %934 = vmatpush1.msra.mxu0 %v917
        %935 = vmatprep.subr.mxu0 0.0
        %936 = vmatpush1.msra.mxu0 %v918
        %937 = vmatprep.subr.mxu0 0.0
        %938 = vmatpush1.msra.mxu0 0.0
        %939 = vmatprep.subr.mxu0 0.0
        %940 = vmatpush1.msra.mxu0 0.0
        %941 = vmatprep.subr.mxu0 0.0
        %942 = vmatpush1.msra.mxu0 0.0
        %943 = vmatprep.subr.mxu0 0.0
        %944 = vmatpush1.msra.mxu0 0.0
        %945 = vmatprep.subr.mxu0 0.0
        %946 = vmatpush1.msra.mxu0 0.0
        %947 = vmatprep.subr.mxu0 0.0
        %948 = vmatpush1.msra.mxu0 0.0
        %949 = vmatprep.subr.mxu0 0.0
        %950 = vmatpush1.msra.mxu0 0.0
        %951 = vmatprep.subr.mxu0 0.0
        %952 = vmatpush1.msra.mxu0 0.0
        %953 = vmatprep.subr.mxu0 0.0
        %954 = vmatpush1.msra.mxu0 0.0
        %955 = vmatprep.subr.mxu0 0.0
        %956 = vmatpush1.msra.mxu0 0.0
        %957 = vmatprep.subr.mxu0 0.0
        %958 = vmatpush1.msra.mxu0 0.0
        %959 = vmatprep.subr.mxu0 0.0
        %960 = vmatpush1.msra.mxu0 0.0
        %961 = vmatprep.subr.mxu0 0.0
        %962 = vmatpush1.msra.mxu0 0.0
        %963 = vmatprep.subr.mxu0 0.0
        %964 = vmatpush1.msra.mxu0 0.0
        %965 = vmatprep.subr.mxu0 0.0
        %966 = vmatpush1.msra.mxu0 0.0
        %967 = vmatprep.subr.mxu0 0.0
        %968 = vmatpush1.msra.mxu0 0.0
        %969 = vmatprep.subr.mxu0 0.0
        %970 = vmatpush1.msra.mxu0 0.0
        %971 = vmatprep.subr.mxu0 0.0
        %972 = vmatpush1.msra.mxu0 0.0
        %973 = vmatprep.subr.mxu0 0.0
        %974 = vmatpush1.msra.mxu0 0.0
        %975 = vmatprep.subr.mxu0 0.0
        %976 = vmatpush1.msra.mxu0 0.0
        %977 = vmatprep.subr.mxu0 0.0
        %978 = vmatpush1.msra.mxu0 0.0
        %979 = vmatprep.subr.mxu0 0.0
        %980 = vmatpush1.msra.mxu0 0.0
        %981 = vmatprep.subr.mxu0 0.0
        %982 = vmatpush1.msra.mxu0 0.0
        %983 = vmatprep.subr.mxu0 0.0
        %984 = vmatpush1.msra.mxu0 0.0
        %985 = vmatprep.subr.mxu0 0.0
        %986 = vmatpush1.msra.mxu0 0.0
        %987 = vmatprep.subr.mxu0 0.0
        %988 = vmatpush1.msra.mxu0 0.0
        %989 = vmatprep.subr.mxu0 0.0
        %990 = vmatpush1.msra.mxu0 0.0
        %991 = vmatprep.subr.mxu0 0.0
        %992 = vmatpush1.msra.mxu0 0.0
        %993 = vmatprep.mubr.f32.mxu0 0.0
        %994 = vmatmul.mubr.f32.gmra.mrb[0].mxu0 %v927
        %v995 = vpop.f32.mrb[0].mxu0
        %v996 = vadd.f32 %v924, %v995
        %v997 = vpop.f32.mrb[0].mxu0
        %998 = vdwg.mxu0
        %vm999 = vcmask 392192
        %1000 = vst.msk [vmem:[#allocation2] sm:$0xff] %vm999, %v996
        %v1001 = vld [vmem:[#allocation19] sm:$0xff]
        %v1002 = vld [vmem:[#allocation19 + $0x8] sm:$0xff]
        %v1003 = vld [vmem:[#allocation19 + $0x10] sm:$0xff]
        %v1004 = vld [vmem:[#allocation19 + $0x18] sm:$0xff]
        %v1005 = vld [vmem:[%s12] sm:$0x1]
        %v1007 = vlaneseq
        %v1008 = vshrl.u32 %v1007, 7
        %v1009 = vsub.s32 0, %v1008
        %v1010 = vrot.slane %v1005, %v1009
        %1012 = vmatprep.subr.mxu0 0.0
        %1013 = vmatpush1.msra.mxu0 %v1001
        %1014 = vmatprep.subr.mxu0 0.0
        %1015 = vmatpush1.msra.mxu0 %v1002
        %1016 = vmatprep.subr.mxu0 0.0
        %1017 = vmatpush1.msra.mxu0 %v1003
        %1018 = vmatprep.subr.mxu0 0.0
        %1019 = vmatpush1.msra.mxu0 %v1004
        %1020 = vmatprep.subr.mxu0 0.0
        %1021 = vmatpush1.msra.mxu0 0.0
        %1022 = vmatprep.subr.mxu0 0.0
        %1023 = vmatpush1.msra.mxu0 0.0
        %1024 = vmatprep.subr.mxu0 0.0
        %1025 = vmatpush1.msra.mxu0 0.0
        %1026 = vmatprep.subr.mxu0 0.0
        %1027 = vmatpush1.msra.mxu0 0.0
        %1028 = vmatprep.subr.mxu0 0.0
        %1029 = vmatpush1.msra.mxu0 0.0
        %1030 = vmatprep.subr.mxu0 0.0
        %1031 = vmatpush1.msra.mxu0 0.0
        %1032 = vmatprep.subr.mxu0 0.0
        %1033 = vmatpush1.msra.mxu0 0.0
        %1034 = vmatprep.subr.mxu0 0.0
        %1035 = vmatpush1.msra.mxu0 0.0
        %1036 = vmatprep.subr.mxu0 0.0
        %1037 = vmatpush1.msra.mxu0 0.0
        %1038 = vmatprep.subr.mxu0 0.0
        %1039 = vmatpush1.msra.mxu0 0.0
        %1040 = vmatprep.subr.mxu0 0.0
        %1041 = vmatpush1.msra.mxu0 0.0
        %1042 = vmatprep.subr.mxu0 0.0
        %1043 = vmatpush1.msra.mxu0 0.0
        %1044 = vmatprep.subr.mxu0 0.0
        %1045 = vmatpush1.msra.mxu0 0.0
        %1046 = vmatprep.subr.mxu0 0.0
        %1047 = vmatpush1.msra.mxu0 0.0
        %1048 = vmatprep.subr.mxu0 0.0
        %1049 = vmatpush1.msra.mxu0 0.0
        %1050 = vmatprep.subr.mxu0 0.0
        %1051 = vmatpush1.msra.mxu0 0.0
        %1052 = vmatprep.subr.mxu0 0.0
        %1053 = vmatpush1.msra.mxu0 0.0
        %1054 = vmatprep.subr.mxu0 0.0
        %1055 = vmatpush1.msra.mxu0 0.0
        %1056 = vmatprep.subr.mxu0 0.0
        %1057 = vmatpush1.msra.mxu0 0.0
        %1058 = vmatprep.subr.mxu0 0.0
        %1059 = vmatpush1.msra.mxu0 0.0
        %1060 = vmatprep.subr.mxu0 0.0
        %1061 = vmatpush1.msra.mxu0 0.0
        %1062 = vmatprep.subr.mxu0 0.0
        %1063 = vmatpush1.msra.mxu0 0.0
        %1064 = vmatprep.subr.mxu0 0.0
        %1065 = vmatpush1.msra.mxu0 0.0
        %1066 = vmatprep.subr.mxu0 0.0
        %1067 = vmatpush1.msra.mxu0 0.0
        %1068 = vmatprep.subr.mxu0 0.0
        %1069 = vmatpush1.msra.mxu0 0.0
        %1070 = vmatprep.subr.mxu0 0.0
        %1071 = vmatpush1.msra.mxu0 0.0
        %1072 = vmatprep.subr.mxu0 0.0
        %1073 = vmatpush1.msra.mxu0 0.0
        %1074 = vmatprep.subr.mxu0 0.0
        %1075 = vmatpush1.msra.mxu0 0.0
        %1076 = vmatprep.mubr.f32.mxu0 0.0
        %1077 = vmatmul.mubr.f32.gmra.mrb[0].mxu0 %v927
        %v1078 = vpop.f32.mrb[0].mxu0
        %v1079 = vadd.f32 %v1010, %v1078
        %v1080 = vpop.f32.mrb[0].mxu0
        %1081 = vdwg.mxu0
        %1082 = vst.msk [vmem:[#allocation3] sm:$0xff] %vm999, %v1079
        %vm1083 = vcmask 130048
        %1084 = vst.msk [vmem:[#allocation4] sm:$0xff] %vm1083, 0.0
        %1085 = vst.msk [vmem:[#allocation5] sm:$0xff] %vm1083, 0.0
        // While loop
        $region101: #{tpu_custom_call.1} parent=71 // loop_pre_header
          _
        $region102: #{tpu_custom_call.1} parent=71 // loop_header
          %s1087 = sphi 0, %s1089
          %p1088 = scmp.ge.s32.totalorder %s1087, %s585
          %v1092 = vphi 0.0, %v1198
        $region103: #{tpu_custom_call.1} parent=71 // loop_header_branch
          %1091 = sbr.rel (%p1088) target = $region107
        $region104: #{tpu_custom_call.1} parent=71 // loop_body
          %s1093 = scalar_lea.vmem [#allocation2], %s1087
          %v1094 = vld [vmem:[%s1093] sm:$0x1]
          %v1095 = vld [vmem:[#allocation16] sm:$0xff]
          %v1096 = vld [vmem:[#allocation16 + $0x8] sm:$0xff]
          %v1097 = vld [vmem:[%s9] sm:$0x1]
          %1099 = vrot.lane.b32.xlu0 %v1092, 112
          %v1100 = vpop.permute.xlu0 %1099
          %v1101 = vsel %vm1083, %v1100, 0
          %1103 = vmatprep.subr.mxu0 0.0
          %1104 = vmatpush1.msra.mxu0 %v1095
          %1105 = vmatprep.subr.mxu0 0.0
          %1106 = vmatpush1.msra.mxu0 %v1096
          %1107 = vmatprep.subr.mxu0 0.0
          %1108 = vmatpush1.msra.mxu0 0.0
          %1109 = vmatprep.subr.mxu0 0.0
          %1110 = vmatpush1.msra.mxu0 0.0
          %1111 = vmatprep.subr.mxu0 0.0
          %1112 = vmatpush1.msra.mxu0 0.0
          %1113 = vmatprep.subr.mxu0 0.0
          %1114 = vmatpush1.msra.mxu0 0.0
          %1115 = vmatprep.subr.mxu0 0.0
          %1116 = vmatpush1.msra.mxu0 0.0
          %1117 = vmatprep.subr.mxu0 0.0
          %1118 = vmatpush1.msra.mxu0 0.0
          %1119 = vmatprep.subr.mxu0 0.0
          %1120 = vmatpush1.msra.mxu0 0.0
          %1121 = vmatprep.subr.mxu0 0.0
          %1122 = vmatpush1.msra.mxu0 0.0
          %1123 = vmatprep.subr.mxu0 0.0
          %1124 = vmatpush1.msra.mxu0 0.0
          %1125 = vmatprep.subr.mxu0 0.0
          %1126 = vmatpush1.msra.mxu0 0.0
          %1127 = vmatprep.subr.mxu0 0.0
          %1128 = vmatpush1.msra.mxu0 0.0
          %1129 = vmatprep.subr.mxu0 0.0
          %1130 = vmatpush1.msra.mxu0 0.0
          %1131 = vmatprep.subr.mxu0 0.0
          %1132 = vmatpush1.msra.mxu0 0.0
          %1133 = vmatprep.subr.mxu0 0.0
          %1134 = vmatpush1.msra.mxu0 0.0
          %1135 = vmatprep.subr.mxu0 0.0
          %1136 = vmatpush1.msra.mxu0 0.0
          %1137 = vmatprep.subr.mxu0 0.0
          %1138 = vmatpush1.msra.mxu0 0.0
          %1139 = vmatprep.subr.mxu0 0.0
          %1140 = vmatpush1.msra.mxu0 0.0
          %1141 = vmatprep.subr.mxu0 0.0
          %1142 = vmatpush1.msra.mxu0 0.0
          %1143 = vmatprep.subr.mxu0 0.0
          %1144 = vmatpush1.msra.mxu0 0.0
          %1145 = vmatprep.subr.mxu0 0.0
          %1146 = vmatpush1.msra.mxu0 0.0
          %1147 = vmatprep.subr.mxu0 0.0
          %1148 = vmatpush1.msra.mxu0 0.0
          %1149 = vmatprep.subr.mxu0 0.0
          %1150 = vmatpush1.msra.mxu0 0.0
          %1151 = vmatprep.subr.mxu0 0.0
          %1152 = vmatpush1.msra.mxu0 0.0
          %1153 = vmatprep.subr.mxu0 0.0
          %1154 = vmatpush1.msra.mxu0 0.0
          %1155 = vmatprep.subr.mxu0 0.0
          %1156 = vmatpush1.msra.mxu0 0.0
          %1157 = vmatprep.subr.mxu0 0.0
          %1158 = vmatpush1.msra.mxu0 0.0
          %1159 = vmatprep.subr.mxu0 0.0
          %1160 = vmatpush1.msra.mxu0 0.0
          %1161 = vmatprep.subr.mxu0 0.0
          %1162 = vmatpush1.msra.mxu0 0.0
          %1163 = vmatprep.subr.mxu0 0.0
          %1164 = vmatpush1.msra.mxu0 0.0
          %1165 = vmatprep.subr.mxu0 0.0
          %1166 = vmatpush1.msra.mxu0 0.0
          %1167 = vmatprep.mubr.f32.mxu0 0.0
          %1168 = vmatmul.mubr.f32.gmra.mrb[0].mxu0 %v1101
          %v1169 = vpop.f32.mrb[0].mxu0
          %v1170 = vadd.f32 %v1097, %v1169
          %v1171 = vpop.f32.mrb[0].mxu0
          %1172 = vdwg.mxu0
          %v1173 = vadd.f32 %v1094, %v1170
          %v1174 = vxor.u32 %v1173, 2147483648
          %v1175 = vmul.f32 %v1174, 1.442695
          %v1176 = vpow.pop %v1175
          %v1177 = vadd.f32 %v1176, 1.0
          %v1178 = vrcp.pop %v1177
          %v1179 = vmul.f32 1.0, %v1178
          %1181 = vrot.lane.b32.xlu0 %v1170, 96
          %v1182 = vpop.permute.xlu0 %1181
          %v1184 = vmul.f32 %v1179, %v1182
          %1186 = vrot.lane.b32.xlu0 %v1184, 32
          %v1187 = vpop.permute.xlu0 %1186
          %v1189 = vadd.f32 %v1094, %v1187
          %v1190 = vtanh.pop %v1189
          %v1191 = vsub.f32 1.0, %v1179
          %1193 = vrot.lane.b32.xlu0 %v1190, 112
          %v1194 = vpop.permute.xlu0 %1193
          %v1196 = vmul.f32 %v1191, %v1194
          %v1197 = vmul.f32 %v1179, %v1092
          %v1198 = vadd.f32 %v1196, %v1197
          %1200 = vrot.lane.b32.xlu0 %v1198, 112
          %v1201 = vpop.permute.xlu0 %1200
          %s1203 = scalar_lea.vmem [#allocation4], %s1087
          %vm1204 = vcmask 122880
          %1205 = vst.msk [vmem:[%s1203] sm:$0x1] %vm1204, %v1201
        $region105: #{tpu_custom_call.1} parent=71 // loop_footer
          %s1089 = sadd.s32 %s1087, 1
        $region106: #{tpu_custom_call.1} parent=71 // loop_footer_branch
          %1086 = sbr.rel target = $region102
        $region107: #{tpu_custom_call.1} parent=71 // loop_exit
          _
        // While loop
        $region108: #{tpu_custom_call.1} parent=71 // loop_pre_header
          _
        $region109: #{tpu_custom_call.1} parent=71 // loop_header
          %s1207 = sphi 0, %s1209
          %p1208 = scmp.ge.s32.totalorder %s1207, %s585
          %v1212 = vphi 0.0, %v1320
        $region110: #{tpu_custom_call.1} parent=71 // loop_header_branch
          %1211 = sbr.rel (%p1208) target = $region114
        $region111: #{tpu_custom_call.1} parent=71 // loop_body
          %s1213 = ssub.s32 %s585, 1
          %s1214 = ssub.s32 %s1213, %s1207
          %s1215 = scalar_lea.vmem [#allocation3], %s1214
          %v1216 = vld [vmem:[%s1215] sm:$0x1]
          %v1217 = vld [vmem:[%s11] sm:$0xff]
          %v1218 = vld [vmem:[%s11 + $0x8] sm:$0xff]
          %v1219 = vld [vmem:[%s13] sm:$0x1]
          %1221 = vrot.lane.b32.xlu0 %v1212, 112
          %v1222 = vpop.permute.xlu0 %1221
          %v1223 = vsel %vm1083, %v1222, 0
          %1225 = vmatprep.subr.mxu0 0.0
          %1226 = vmatpush1.msra.mxu0 %v1217
          %1227 = vmatprep.subr.mxu0 0.0
          %1228 = vmatpush1.msra.mxu0 %v1218
          %1229 = vmatprep.subr.mxu0 0.0
          %1230 = vmatpush1.msra.mxu0 0.0
          %1231 = vmatprep.subr.mxu0 0.0
          %1232 = vmatpush1.msra.mxu0 0.0
          %1233 = vmatprep.subr.mxu0 0.0
          %1234 = vmatpush1.msra.mxu0 0.0
          %1235 = vmatprep.subr.mxu0 0.0
          %1236 = vmatpush1.msra.mxu0 0.0
          %1237 = vmatprep.subr.mxu0 0.0
          %1238 = vmatpush1.msra.mxu0 0.0
          %1239 = vmatprep.subr.mxu0 0.0
          %1240 = vmatpush1.msra.mxu0 0.0
          %1241 = vmatprep.subr.mxu0 0.0
          %1242 = vmatpush1.msra.mxu0 0.0
          %1243 = vmatprep.subr.mxu0 0.0
          %1244 = vmatpush1.msra.mxu0 0.0
          %1245 = vmatprep.subr.mxu0 0.0
          %1246 = vmatpush1.msra.mxu0 0.0
          %1247 = vmatprep.subr.mxu0 0.0
          %1248 = vmatpush1.msra.mxu0 0.0
          %1249 = vmatprep.subr.mxu0 0.0
          %1250 = vmatpush1.msra.mxu0 0.0
          %1251 = vmatprep.subr.mxu0 0.0
          %1252 = vmatpush1.msra.mxu0 0.0
          %1253 = vmatprep.subr.mxu0 0.0
          %1254 = vmatpush1.msra.mxu0 0.0
          %1255 = vmatprep.subr.mxu0 0.0
          %1256 = vmatpush1.msra.mxu0 0.0
          %1257 = vmatprep.subr.mxu0 0.0
          %1258 = vmatpush1.msra.mxu0 0.0
          %1259 = vmatprep.subr.mxu0 0.0
          %1260 = vmatpush1.msra.mxu0 0.0
          %1261 = vmatprep.subr.mxu0 0.0
          %1262 = vmatpush1.msra.mxu0 0.0
          %1263 = vmatprep.subr.mxu0 0.0
          %1264 = vmatpush1.msra.mxu0 0.0
          %1265 = vmatprep.subr.mxu0 0.0
          %1266 = vmatpush1.msra.mxu0 0.0
          %1267 = vmatprep.subr.mxu0 0.0
          %1268 = vmatpush1.msra.mxu0 0.0
          %1269 = vmatprep.subr.mxu0 0.0
          %1270 = vmatpush1.msra.mxu0 0.0
          %1271 = vmatprep.subr.mxu0 0.0
          %1272 = vmatpush1.msra.mxu0 0.0
          %1273 = vmatprep.subr.mxu0 0.0
          %1274 = vmatpush1.msra.mxu0 0.0
          %1275 = vmatprep.subr.mxu0 0.0
          %1276 = vmatpush1.msra.mxu0 0.0
          %1277 = vmatprep.subr.mxu0 0.0
          %1278 = vmatpush1.msra.mxu0 0.0
          %1279 = vmatprep.subr.mxu0 0.0
          %1280 = vmatpush1.msra.mxu0 0.0
          %1281 = vmatprep.subr.mxu0 0.0
          %1282 = vmatpush1.msra.mxu0 0.0
          %1283 = vmatprep.subr.mxu0 0.0
          %1284 = vmatpush1.msra.mxu0 0.0
          %1285 = vmatprep.subr.mxu0 0.0
          %1286 = vmatpush1.msra.mxu0 0.0
          %1287 = vmatprep.subr.mxu0 0.0
          %1288 = vmatpush1.msra.mxu0 0.0
          %1289 = vmatprep.mubr.f32.mxu0 0.0
          %1290 = vmatmul.mubr.f32.gmra.mrb[0].mxu0 %v1223
          %v1291 = vpop.f32.mrb[0].mxu0
          %v1292 = vadd.f32 %v1219, %v1291
          %v1293 = vpop.f32.mrb[0].mxu0
          %1294 = vdwg.mxu0
          %v1295 = vadd.f32 %v1216, %v1292
          %v1296 = vxor.u32 %v1295, 2147483648
          %v1297 = vmul.f32 %v1296, 1.442695
          %v1298 = vpow.pop %v1297
          %v1299 = vadd.f32 %v1298, 1.0
          %v1300 = vrcp.pop %v1299
          %v1301 = vmul.f32 1.0, %v1300
          %1303 = vrot.lane.b32.xlu0 %v1292, 96
          %v1304 = vpop.permute.xlu0 %1303
          %v1306 = vmul.f32 %v1301, %v1304
          %1308 = vrot.lane.b32.xlu0 %v1306, 32
          %v1309 = vpop.permute.xlu0 %1308
          %v1311 = vadd.f32 %v1216, %v1309
          %v1312 = vtanh.pop %v1311
          %v1313 = vsub.f32 1.0, %v1301
          %1315 = vrot.lane.b32.xlu0 %v1312, 112
          %v1316 = vpop.permute.xlu0 %1315
          %v1318 = vmul.f32 %v1313, %v1316
          %v1319 = vmul.f32 %v1301, %v1212
          %v1320 = vadd.f32 %v1318, %v1319
          %1322 = vrot.lane.b32.xlu0 %v1320, 112
          %v1323 = vpop.permute.xlu0 %1322
          %s1325 = scalar_lea.vmem [#allocation5], %s1214
          %vm1326 = vcmask 122880
          %1327 = vst.msk [vmem:[%s1325] sm:$0x1] %vm1326, %v1323
        $region112: #{tpu_custom_call.1} parent=71 // loop_footer
          %s1209 = sadd.s32 %s1207, 1
        $region113: #{tpu_custom_call.1} parent=71 // loop_footer_branch
          %1206 = sbr.rel target = $region109
        $region114: #{tpu_custom_call.1} parent=71 // loop_exit
          _
        %v1328 = vld [vmem:[#allocation4] sm:$0xff]
        %v1329 = vld [vmem:[#allocation5] sm:$0xff]
        %1331 = vrot.lane.b32.xlu0 %v1329, 16
        %v1332 = vpop.permute.xlu0 %1331
        %v1334 = vsel %vm1083, %v1328, %v1332
        %1335 = vst.msk [vmem:[%s580] sm:$0xff] %vm674, %v1334
        %s1336 = sand.u32 %s336, 1
        %s1337 = scalar_lea.sflag [#allocation10], %s1336
        %s1338 = sand.u32 %s336, 1
        %s1339 = smul.addr %s1338, 8
        %s1340 = scalar_lea.vmem [#allocation20], %s1339
        // Predicated region
        $region115: #{tpu_custom_call.1} parent=71 // pred_check
          %p1341 = pneg %p346
        $region116: #{tpu_custom_call.1} parent=71 // pred_check_branch
          %1343 = sbr.rel (%p1341) target = $region118
        $region117: #{tpu_custom_call.1} parent=71 // pred_region
          %s1345 = ssub.s32 128, 128
          %1346 = vsyncadd %s1337, %s1345
          %s1347 = smul.addr %s40, 128
          %s1348 = scalar_lea.hbm %s14, %s1347
          %s1350 = sshll.u32 %s1340, 4
          %s1351 = int_to_ptr.vmem [resolvable:$true] %s1350
          %1353 = dma.vmem_to_hbm [thread:$0]  %s1351, 128, %s1348, %s1337
        $region118: #{tpu_custom_call.1} parent=71 // pred_fallthru
          _
      $region72: #{tpu_custom_call.1} parent=5 // pred_fallthru
        _
      %p1354 = scmp.le.s32.totalorder 2, %s35
      // Predicated region
      $region119: #{tpu_custom_call.1} parent=5 // pred_check
        %p1355 = pneg %p1354
      $region120: #{tpu_custom_call.1} parent=5 // pred_check_branch
        %1357 = sbr.rel (%p1355) target = $region122
      $region121: #{tpu_custom_call.1} parent=5 // pred_region
        %s1358 = ssub.s32 %s35, 2
        // Predicated region
        $region123: #{tpu_custom_call.1} parent=121 // pred_check
          %p1359 = pneg %p352
        $region124: #{tpu_custom_call.1} parent=121 // pred_check_branch
          %1361 = sbr.rel (%p1359) target = $region126
        $region125: #{tpu_custom_call.1} parent=121 // pred_region
          %s1362 = sand.u32 %s337, 1
          %s1363 = scalar_lea.sflag [#allocation10], %s1362
          %s1364 = sand.u32 %s337, 1
          %s1365 = smul.addr %s1364, 8
          %s1366 = scalar_lea.vmem [#allocation20], %s1365
          %1367 = dma.done %s1363, 128
        $region126: #{tpu_custom_call.1} parent=121 // pred_fallthru
          _
      $region122: #{tpu_custom_call.1} parent=5 // pred_fallthru
        _
    $region6: #{tpu_custom_call.1} parent=1 // loop_footer
      %s39 = sadd.s32 1, %s35
    $region7: #{tpu_custom_call.1} parent=1 // loop_footer_branch
      %34 = sbr.rel target = $region3
    $region8: #{tpu_custom_call.1} parent=1 // loop_exit
      _
    %1368 = vsyncpa [#allocation9], 1
    %s1369 = scalar_lea.sflag [#allocation9], 1
    %1370 = vsyncpa %s1369, 1
    %1371 = vsyncpa [#allocation12], 1
    %s1372 = scalar_lea.sflag [#allocation12], 1
    %1373 = vsyncpa %s1372, 1
    %1374 = vsyncpa [#allocation15], 1
    %1375 = vsyncpa [#allocation18], 1
    %1376 = vsyncpa [#allocation10], 1
    %s1377 = scalar_lea.sflag [#allocation10], 1
    %1378 = vsyncpa %s1377, 1

</llo_original>
